<compile_context>
chip_gen: v6e
topology: v6e:2x2x1
jax: 0.10.0
libtpu: 0.0.40
codegen_flags: <defaults>
</compile_context>

<pallas_src>
import jax
import jax.numpy as jnp
from jax import lax
from jax.experimental import pallas as pl
from jax.experimental.pallas import tpu as pltpu


def lstm_kernel(tmax_ref,    # (1,)  int32 SMEM (scalar prefetch): max(lengths)
                len_ref,     # (B,1) int32 VMEM: per-example lengths (mask)
                x_ref,       # (CH*B, E)  bf16: one time chunk, time-major, flattened
                wih_ref,     # (E, 4H)    bf16: W_ih^T
                whh_ref,     # (H, 4H)    bf16: W_hh^T
                b_ref,       # (1, 4H)    f32 : b_ih + b_hh
                wout_ref,    # (H, Np)    bf16: W_out^T zero-padded to lane width
                bout_ref,    # (1, Np)    f32 : b_out zero-padded to lane width
                out_ref,     # (B, Np)    f32 : final logits (lane-padded)
                xproj_ref,   # (CH*B, 4H) f32 VMEM scratch: chunk input projection
                h_ref,       # (B, H)     f32 VMEM scratch: hidden state
                c_ref):      # (B, H)     f32 VMEM scratch: cell state
    CHB = xproj_ref.shape[0]
    B = len_ref.shape[0]
    CH = CHB // B
    H = whh_ref.shape[0]

    k = pl.program_id(0)
    chunk_start = k * CH
    t_max = tmax_ref[0]            # robust to unsorted lengths (wrapper passes max)

    @pl.when(k == 0)
    def _init():
        h_ref[...] = jnp.zeros_like(h_ref)
        c_ref[...] = jnp.zeros_like(c_ref)

    @pl.when(chunk_start < t_max)  # skip fully-masked tail chunks entirely
    def _chunk():
        # Chunk-hoisted input projection: one (CH*B, E) @ (E, 4H) bf16 MXU matmul,
        # f32 accumulation, bias folded in.  Fills MXU rows (M = CH*B, not B).
        xproj_ref[...] = (
            jnp.dot(x_ref[...], wih_ref[...], preferred_element_type=jnp.float32)
            + b_ref[...])

        # Hoisted out of the time loop (JAX does not CSE broadcast_in_dim).
        len_bcast = jnp.broadcast_to(len_ref[...], (B, H))   # (B, H) int32
        whh = whh_ref[...]                                   # (H, 4H) bf16

        def sig(v):   # sigmoid via tanh: 1 EUP op instead of exp + reciprocal
            return 0.5 * (jnp.tanh(0.5 * v) + 1.0)

        def step(t, carry):
            h, c = carry
            x_proj_t = xproj_ref[pl.ds(t * B, B), :]          # (B, 4H) f32
            # Only the small h @ W_hh^T matmul stays on the serial critical path.
            gates = x_proj_t + jnp.dot(h.astype(jnp.bfloat16), whh,
                                       preferred_element_type=jnp.float32)
            # PyTorch gate order i, f, g, o; H == 128 -> lane-aligned slices.
            i_g = sig(gates[:, 0 * H:1 * H])
            f_g = sig(gates[:, 1 * H:2 * H])
            g_g = jnp.tanh(gates[:, 2 * H:3 * H])
            o_g = sig(gates[:, 3 * H:4 * H])
            c_new = f_g * c + i_g * g_g
            h_new = o_g * jnp.tanh(c_new)
            # Packed-sequence semantics: freeze (h, c) once t >= length[b].
            mask = (chunk_start + t) < len_bcast              # (B, H) bool
            return jnp.where(mask, h_new, h), jnp.where(mask, c_new, c)

        h, c = lax.fori_loop(0, CH, step, (h_ref[...], c_ref[...]), unroll=True)
        h_ref[...] = h
        c_ref[...] = c

    @pl.when(k == pl.num_programs(0) - 1)
    def _finalize():
        # torch.max(h_n, 0) over the size-1 layer dim == h_n[0]; then the Linear,
        # lane-padded so the output store is a full-width (unmasked) vst.
        out_ref[...] = (
            jnp.dot(h_ref[...].astype(jnp.bfloat16), wout_ref[...],
                    preferred_element_type=jnp.float32)
            + bout_ref[...])


@jax.jit
def lstm_forward(x_ids, lengths, params):
    emb_tbl = params["embedding"]                      # (V, E) f32
    # Gather directly in time-major order: no separate transpose copy.
    x_tm = emb_tbl[x_ids.T]                            # (T, B, E)
    T, B, E = x_tm.shape
    H = params["w_hh"].shape[1]
    C = params["w_out"].shape[0]
    n_pad = ((C + 127) // 128) * 128                   # lane-dense output width

    CH = 8                                             # timesteps per pipelined chunk
    n_chunks = (T + CH - 1) // CH
    T_pad = n_chunks * CH

    x2d = x_tm.reshape(T * B, E).astype(jnp.bfloat16)  # bf16 halves HBM read + DMA
    if T_pad != T:
        x2d = jnp.pad(x2d, ((0, (T_pad - T) * B), (0, 0)))

    wih_b = params["w_ih"].T.astype(jnp.bfloat16)      # (E, 4H)
    whh_b = params["w_hh"].T.astype(jnp.bfloat16)      # (H, 4H)
    b_all = (params["b_ih"] + params["b_hh"]).reshape(1, 4 * H).astype(jnp.float32)
    wout_pad = jnp.zeros((H, n_pad), jnp.bfloat16).at[:, :C].set(
        params["w_out"].T.astype(jnp.bfloat16))
    bout_pad = jnp.zeros((1, n_pad), jnp.float32).at[:, :C].set(params["b_out"])

    len2d = lengths.astype(jnp.int32).reshape(B, 1)    # VMEM mask operand
    tmax = jnp.max(lengths).astype(jnp.int32).reshape(1)   # SMEM scalar prefetch

    out_pad = pl.pallas_call(
        lstm_kernel,
        out_shape=jax.ShapeDtypeStruct((B, n_pad), jnp.float32),
        grid_spec=pltpu.PrefetchScalarGridSpec(
            num_scalar_prefetch=1,                     # max(lengths) -> SMEM
            grid=(n_chunks,),                          # sequential over time chunks
            in_specs=[
                pl.BlockSpec((B, 1), lambda k, tm: (0, 0)),        # lengths (mask)
                pl.BlockSpec((CH * B, E), lambda k, tm: (k, 0)),   # x chunk (auto dbl-buffered)
                pl.BlockSpec((E, 4 * H), lambda k, tm: (0, 0)),    # W_ih^T
                pl.BlockSpec((H, 4 * H), lambda k, tm: (0, 0)),    # W_hh^T
                pl.BlockSpec((1, 4 * H), lambda k, tm: (0, 0)),    # bias (ih+hh)
                pl.BlockSpec((H, n_pad), lambda k, tm: (0, 0)),    # W_out^T (padded)
                pl.BlockSpec((1, n_pad), lambda k, tm: (0, 0)),    # b_out (padded)
            ],
            out_specs=pl.BlockSpec((B, n_pad), lambda k, tm: (0, 0)),
            scratch_shapes=[
                pltpu.VMEM((CH * B, 4 * H), jnp.float32),          # chunk X @ W_ih^T + b
                pltpu.VMEM((B, H), jnp.float32),                   # h state
                pltpu.VMEM((B, H), jnp.float32),                   # c state
            ],
        ),
        compiler_params=pltpu.CompilerParams(
            dimension_semantics=("arbitrary",),        # serial dependence across chunks
            vmem_limit_bytes=32 * 1024 * 1024,         # explicit; usage is O(CH), not O(T)
        ),
    )(tmax, len2d, x2d, wih_b, whh_b, b_all, wout_pad, bout_pad)
    return out_pad[:, :C]


def lstm_reference(x_ids, lengths, params):
    """Pure-JAX f32 reference reproducing the PyTorch module semantics."""
    emb = params["embedding"][x_ids]                   # (B, T, E)
    B, T, E = emb.shape
    H = params["w_hh"].shape[1]
    h = jnp.zeros((B, H), jnp.float32)
    c = jnp.zeros((B, H), jnp.float32)
    wih_t, whh_t = params["w_ih"].T, params["w_hh"].T
    b = params["b_ih"] + params["b_hh"]
    for t in range(T):
        gates = emb[:, t, :] @ wih_t + h @ whh_t + b
        i_g = jax.nn.sigmoid(gates[:, 0 * H:1 * H])
        f_g = jax.nn.sigmoid(gates[:, 1 * H:2 * H])
        g_g = jnp.tanh(gates[:, 2 * H:3 * H])
        o_g = jax.nn.sigmoid(gates[:, 3 * H:4 * H])
        c_new = f_g * c + i_g * g_g
        h_new = o_g * jnp.tanh(c_new)
        mask = (t < lengths)[:, None]
        c = jnp.where(mask, c_new, c)
        h = jnp.where(mask, h_new, h)
    return h @ params["w_out"].T + params["b_out"]


def init_params(key, emb_num, emb_dim, hid_dim, class_num):
    ks = jax.random.split(key, 7)
    s = 1.0 / jnp.sqrt(hid_dim)
    return {
        "embedding": jax.random.normal(ks[0], (emb_num, emb_dim), jnp.float32),
        "w_ih": jax.random.uniform(ks[1], (4 * hid_dim, emb_dim), jnp.float32, -s, s),
        "w_hh": jax.random.uniform(ks[2], (4 * hid_dim, hid_dim), jnp.float32, -s, s),
        "b_ih": jax.random.uniform(ks[3], (4 * hid_dim,), jnp.float32, -s, s),
        "b_hh": jax.random.uniform(ks[4], (4 * hid_dim,), jnp.float32, -s, s),
        "w_out": jax.random.uniform(ks[5], (class_num, hid_dim), jnp.float32, -s, s),
        "b_out": jax.random.uniform(ks[6], (class_num,), jnp.float32, -s, s),
    }


if __name__ == "__main__":
    # Small shapes consistent with the module (emb_num/emb_dim/hid_dim scaled down
    # to lane-friendly sizes).
    EMB_NUM, EMB_DIM, HID_DIM, CLASS_NUM = 64, 128, 128, 2
    B, T = 8, 10

    key = jax.random.PRNGKey(0)
    kp, kx = jax.random.split(key)
    params = init_params(kp, EMB_NUM, EMB_DIM, HID_DIM, CLASS_NUM)

    x_ids = jax.random.randint(kx, (B, T), 0, EMB_NUM, dtype=jnp.int32)
    # pack_padded_sequence contract is descending lengths; the kernel no longer
    # relies on it (max(lengths) is prefetched), but keep the same test inputs.
    lengths = jnp.array([10, 9, 8, 7, 6, 5, 4, 3], dtype=jnp.int32)

    out = jax.block_until_ready(lstm_forward(x_ids, lengths, params))
    ref = lstm_reference(x_ids, lengths, params)

    assert out.shape == (B, CLASS_NUM)
    # bf16 MXU operands (f32 accumulation) vs. the pure-f32 reference: observed
    # error is O(1e-3); assert at 1e-2 to keep headroom.
    assert jnp.allclose(out, ref, rtol=1e-2, atol=1e-2), (out, ref)

    print("KERNEL_OK")
</pallas_src>

<mosaic_0001>
module attributes {stable_mosaic.version = 11 : i64} {
  func.func @lstm_kernel(%arg0: i32, %arg1: memref<1xi32, #tpu.memory_space<smem>>, %arg2: memref<8x1xi32, #tpu.memory_space<vmem>>, %arg3: memref<64x128xbf16, #tpu.memory_space<vmem>>, %arg4: memref<128x512xbf16, #tpu.memory_space<vmem>>, %arg5: memref<128x512xbf16, #tpu.memory_space<vmem>>, %arg6: memref<1x512xf32, #tpu.memory_space<vmem>>, %arg7: memref<128x128xbf16, #tpu.memory_space<vmem>>, %arg8: memref<1x128xf32, #tpu.memory_space<vmem>>, %arg9: memref<8x128xf32, #tpu.memory_space<vmem>>, %arg10: memref<64x512xf32, #tpu.memory_space<vmem>>, %arg11: memref<8x128xf32, #tpu.memory_space<vmem>>, %arg12: memref<8x128xf32, #tpu.memory_space<vmem>>) attributes {dimension_semantics = [#tpu.dimension_semantics<arbitrary>], iteration_bounds = array<i64: 2>, scalar_prefetch = 1 : i64, scratch_operands = 3 : i64, tpu.core_type = #tpu.core_type<tc>, window_params = [{pipeline_mode = #tpu.pipeline_mode<synchronous>, transform_indices = @transform_0, window_bounds = array<i64: 8, 1>}, {transform_indices = @transform_1, window_bounds = array<i64: 64, 128>}, {pipeline_mode = #tpu.pipeline_mode<synchronous>, transform_indices = @transform_2, window_bounds = array<i64: 128, 512>}, {pipeline_mode = #tpu.pipeline_mode<synchronous>, transform_indices = @transform_3, window_bounds = array<i64: 128, 512>}, {pipeline_mode = #tpu.pipeline_mode<synchronous>, transform_indices = @transform_4, window_bounds = array<i64: 1, 512>}, {pipeline_mode = #tpu.pipeline_mode<synchronous>, transform_indices = @transform_5, window_bounds = array<i64: 128, 128>}, {pipeline_mode = #tpu.pipeline_mode<synchronous>, transform_indices = @transform_6, window_bounds = array<i64: 1, 128>}, {pipeline_mode = #tpu.pipeline_mode<synchronous>, transform_indices = @transform_7, window_bounds = array<i64: 8, 128>}]} {
    %c8_i32 = arith.constant 8 : i32
    %0 = arith.muli %arg0, %c8_i32 : i32
    %c0 = arith.constant 0 : index
    %1 = memref.load %arg1[%c0] : memref<1xi32, #tpu.memory_space<smem>>
    %c0_i32 = arith.constant 0 : i32
    %2 = arith.cmpi eq, %arg0, %c0_i32 : i32
    %3 = arith.extui %2 : i1 to i32
    %c0_i32_0 = arith.constant 0 : i32
    %4 = arith.cmpi ne, %3, %c0_i32_0 : i32
    scf.if %4 {
      %cst = arith.constant 0.000000e+00 : f32
      %11 = vector.broadcast %cst : f32 to vector<8x128xf32>
      %c0_3 = arith.constant 0 : index
      %c0_4 = arith.constant 0 : index
      %12 = vector.load %arg11[%c0_3, %c0_4] : memref<8x128xf32, #tpu.memory_space<vmem>>, vector<8x128xf32>
      tpu.vector_store %arg11[%c0_3, %c0_4], %11 {strides = array<i32>} : memref<8x128xf32, #tpu.memory_space<vmem>>, vector<8x128xf32>,
      %cst_5 = arith.constant 0.000000e+00 : f32
      %13 = vector.broadcast %cst_5 : f32 to vector<8x128xf32>
      %c0_6 = arith.constant 0 : index
      %c0_7 = arith.constant 0 : index
      %14 = vector.load %arg12[%c0_6, %c0_7] : memref<8x128xf32, #tpu.memory_space<vmem>>, vector<8x128xf32>
      tpu.vector_store %arg12[%c0_6, %c0_7], %13 {strides = array<i32>} : memref<8x128xf32, #tpu.memory_space<vmem>>, vector<8x128xf32>,
    } else {
    }
    %5 = arith.cmpi slt, %0, %1 : i32
    %6 = arith.extui %5 : i1 to i32
    %c0_i32_1 = arith.constant 0 : i32
    %7 = arith.cmpi ne, %6, %c0_i32_1 : i32
    scf.if %7 {
      %c0_3 = arith.constant 0 : index
      %c0_4 = arith.constant 0 : index
      %11 = vector.load %arg3[%c0_3, %c0_4] : memref<64x128xbf16, #tpu.memory_space<vmem>>, vector<64x128xbf16>
      %c0_5 = arith.constant 0 : index
      %c0_6 = arith.constant 0 : index
      %12 = vector.load %arg4[%c0_5, %c0_6] : memref<128x512xbf16, #tpu.memory_space<vmem>>, vector<128x512xbf16>
      %cst = arith.constant dense<0.000000e+00> : vector<64x512xf32>
      %13 = tpu.matmul %11, %12, %cst {dimension_numbers = #tpu.dot_dimension_numbers<[1], [0], [0], [1], [0, 0, 1, 1], [], []>} : vector<64x128xbf16>, vector<128x512xbf16>, vector<64x512xf32> -> vector<64x512xf32>
      %c0_7 = arith.constant 0 : index
      %c0_8 = arith.constant 0 : index
      %14 = vector.load %arg6[%c0_7, %c0_8] : memref<1x512xf32, #tpu.memory_space<vmem>>, vector<1x512xf32>
      %15 = vector.broadcast %14 : vector<1x512xf32> to vector<64x512xf32>
      %16 = arith.addf %13, %15 : vector<64x512xf32>
      %c0_9 = arith.constant 0 : index
      %c0_10 = arith.constant 0 : index
      %17 = vector.load %arg10[%c0_9, %c0_10] : memref<64x512xf32, #tpu.memory_space<vmem>>, vector<64x512xf32>
      tpu.vector_store %arg10[%c0_9, %c0_10], %16 {strides = array<i32>} : memref<64x512xf32, #tpu.memory_space<vmem>>, vector<64x512xf32>,
      %c0_11 = arith.constant 0 : index
      %c0_12 = arith.constant 0 : index
      %18 = vector.load %arg2[%c0_11, %c0_12] : memref<8x1xi32, #tpu.memory_space<vmem>>, vector<8x1xi32>
      %19 = vector.shape_cast %18 : vector<8x1xi32> to vector<8x1xi32>
      %20 = vector.broadcast %19 : vector<8x1xi32> to vector<8x128xi32>
      %c0_13 = arith.constant 0 : index
      %c0_14 = arith.constant 0 : index
      %21 = vector.load %arg5[%c0_13, %c0_14] : memref<128x512xbf16, #tpu.memory_space<vmem>>, vector<128x512xbf16>
      %c0_15 = arith.constant 0 : index
      %c0_16 = arith.constant 0 : index
      %22 = vector.load %arg11[%c0_15, %c0_16] : memref<8x128xf32, #tpu.memory_space<vmem>>, vector<8x128xf32>
      %c0_17 = arith.constant 0 : index
      %c0_18 = arith.constant 0 : index
      %23 = vector.load %arg12[%c0_17, %c0_18] : memref<8x128xf32, #tpu.memory_space<vmem>>, vector<8x128xf32>
      %c0_i32_19 = arith.constant 0 : i32
      %c8_i32_20 = arith.constant 8 : i32
      %24 = arith.muli %c0_i32_19, %c8_i32_20 : i32
      %25 = arith.index_cast %24 : i32 to index
      %c0_21 = arith.constant 0 : index
      %26 = vector.load %arg10[%25, %c0_21] : memref<64x512xf32, #tpu.memory_space<vmem>>, vector<8x512xf32>
      %27 = arith.truncf %22 : vector<8x128xf32> to vector<8x128xbf16>
      %cst_22 = arith.constant dense<0.000000e+00> : vector<8x512xf32>
      %28 = tpu.matmul %27, %21, %cst_22 {dimension_numbers = #tpu.dot_dimension_numbers<[1], [0], [0], [1], [0, 0, 1, 1], [], []>} : vector<8x128xbf16>, vector<128x512xbf16>, vector<8x512xf32> -> vector<8x512xf32>
      %29 = arith.addf %26, %28 : vector<8x512xf32>
      %30 = vector.extract_strided_slice %29 {offsets = [0, 0], sizes = [8, 128], strides = [1, 1]} : vector<8x512xf32> to vector<8x128xf32>
      %cst_23 = arith.constant 5.000000e-01 : f32
      %31 = vector.broadcast %cst_23 : f32 to vector<8x128xf32>
      %32 = arith.mulf %31, %30 : vector<8x128xf32>
      %33 = math.tanh %32 : vector<8x128xf32>
      %cst_24 = arith.constant 1.000000e+00 : f32
      %34 = vector.broadcast %cst_24 : f32 to vector<8x128xf32>
      %35 = arith.addf %33, %34 : vector<8x128xf32>
      %cst_25 = arith.constant 5.000000e-01 : f32
      %36 = vector.broadcast %cst_25 : f32 to vector<8x128xf32>
      %37 = arith.mulf %36, %35 : vector<8x128xf32>
      %38 = vector.extract_strided_slice %29 {offsets = [0, 128], sizes = [8, 128], strides = [1, 1]} : vector<8x512xf32> to vector<8x128xf32>
      %cst_26 = arith.constant 5.000000e-01 : f32
      %39 = vector.broadcast %cst_26 : f32 to vector<8x128xf32>
      %40 = arith.mulf %39, %38 : vector<8x128xf32>
      %41 = math.tanh %40 : vector<8x128xf32>
      %cst_27 = arith.constant 1.000000e+00 : f32
      %42 = vector.broadcast %cst_27 : f32 to vector<8x128xf32>
      %43 = arith.addf %41, %42 : vector<8x128xf32>
      %cst_28 = arith.constant 5.000000e-01 : f32
      %44 = vector.broadcast %cst_28 : f32 to vector<8x128xf32>
      %45 = arith.mulf %44, %43 : vector<8x128xf32>
      %46 = vector.extract_strided_slice %29 {offsets = [0, 256], sizes = [8, 128], strides = [1, 1]} : vector<8x512xf32> to vector<8x128xf32>
      %47 = math.tanh %46 : vector<8x128xf32>
      %48 = vector.extract_strided_slice %29 {offsets = [0, 384], sizes = [8, 128], strides = [1, 1]} : vector<8x512xf32> to vector<8x128xf32>
      %cst_29 = arith.constant 5.000000e-01 : f32
      %49 = vector.broadcast %cst_29 : f32 to vector<8x128xf32>
      %50 = arith.mulf %49, %48 : vector<8x128xf32>
      %51 = math.tanh %50 : vector<8x128xf32>
      %cst_30 = arith.constant 1.000000e+00 : f32
      %52 = vector.broadcast %cst_30 : f32 to vector<8x128xf32>
      %53 = arith.addf %51, %52 : vector<8x128xf32>
      %cst_31 = arith.constant 5.000000e-01 : f32
      %54 = vector.broadcast %cst_31 : f32 to vector<8x128xf32>
      %55 = arith.mulf %54, %53 : vector<8x128xf32>
      %56 = arith.mulf %45, %23 : vector<8x128xf32>
      %57 = arith.mulf %37, %47 : vector<8x128xf32>
      %58 = arith.addf %56, %57 : vector<8x128xf32>
      %59 = math.tanh %58 : vector<8x128xf32>
      %60 = arith.mulf %55, %59 : vector<8x128xf32>
      %61 = arith.addi %0, %c0_i32_19 : i32
      %62 = vector.broadcast %61 : i32 to vector<8x128xi32>
      %63 = arith.cmpi slt, %62, %20 : vector<8x128xi32>
      %64 = arith.select %63, %60, %22 : vector<8x128xi1>, vector<8x128xf32>
      %65 = arith.select %63, %58, %23 : vector<8x128xi1>, vector<8x128xf32>
      %c1_i32_32 = arith.constant 1 : i32
      %c8_i32_33 = arith.constant 8 : i32
      %66 = arith.muli %c1_i32_32, %c8_i32_33 : i32
      %67 = arith.index_cast %66 : i32 to index
      %c0_34 = arith.constant 0 : index
      %68 = vector.load %arg10[%67, %c0_34] : memref<64x512xf32, #tpu.memory_space<vmem>>, vector<8x512xf32>
      %69 = arith.truncf %64 : vector<8x128xf32> to vector<8x128xbf16>
      %cst_35 = arith.constant dense<0.000000e+00> : vector<8x512xf32>
      %70 = tpu.matmul %69, %21, %cst_35 {dimension_numbers = #tpu.dot_dimension_numbers<[1], [0], [0], [1], [0, 0, 1, 1], [], []>} : vector<8x128xbf16>, vector<128x512xbf16>, vector<8x512xf32> -> vector<8x512xf32>
      %71 = arith.addf %68, %70 : vector<8x512xf32>
      %72 = vector.extract_strided_slice %71 {offsets = [0, 0], sizes = [8, 128], strides = [1, 1]} : vector<8x512xf32> to vector<8x128xf32>
      %cst_36 = arith.constant 5.000000e-01 : f32
      %73 = vector.broadcast %cst_36 : f32 to vector<8x128xf32>
      %74 = arith.mulf %73, %72 : vector<8x128xf32>
      %75 = math.tanh %74 : vector<8x128xf32>
      %cst_37 = arith.constant 1.000000e+00 : f32
      %76 = vector.broadcast %cst_37 : f32 to vector<8x128xf32>
      %77 = arith.addf %75, %76 : vector<8x128xf32>
      %cst_38 = arith.constant 5.000000e-01 : f32
      %78 = vector.broadcast %cst_38 : f32 to vector<8x128xf32>
      %79 = arith.mulf %78, %77 : vector<8x128xf32>
      %80 = vector.extract_strided_slice %71 {offsets = [0, 128], sizes = [8, 128], strides = [1, 1]} : vector<8x512xf32> to vector<8x128xf32>
      %cst_39 = arith.constant 5.000000e-01 : f32
      %81 = vector.broadcast %cst_39 : f32 to vector<8x128xf32>
      %82 = arith.mulf %81, %80 : vector<8x128xf32>
      %83 = math.tanh %82 : vector<8x128xf32>
      %cst_40 = arith.constant 1.000000e+00 : f32
      %84 = vector.broadcast %cst_40 : f32 to vector<8x128xf32>
      %85 = arith.addf %83, %84 : vector<8x128xf32>
      %cst_41 = arith.constant 5.000000e-01 : f32
      %86 = vector.broadcast %cst_41 : f32 to vector<8x128xf32>
      %87 = arith.mulf %86, %85 : vector<8x128xf32>
      %88 = vector.extract_strided_slice %71 {offsets = [0, 256], sizes = [8, 128], strides = [1, 1]} : vector<8x512xf32> to vector<8x128xf32>
      %89 = math.tanh %88 : vector<8x128xf32>
      %90 = vector.extract_strided_slice %71 {offsets = [0, 384], sizes = [8, 128], strides = [1, 1]} : vector<8x512xf32> to vector<8x128xf32>
      %cst_42 = arith.constant 5.000000e-01 : f32
      %91 = vector.broadcast %cst_42 : f32 to vector<8x128xf32>
      %92 = arith.mulf %91, %90 : vector<8x128xf32>
      %93 = math.tanh %92 : vector<8x128xf32>
      %cst_43 = arith.constant 1.000000e+00 : f32
      %94 = vector.broadcast %cst_43 : f32 to vector<8x128xf32>
      %95 = arith.addf %93, %94 : vector<8x128xf32>
      %cst_44 = arith.constant 5.000000e-01 : f32
      %96 = vector.broadcast %cst_44 : f32 to vector<8x128xf32>
      %97 = arith.mulf %96, %95 : vector<8x128xf32>
      %98 = arith.mulf %87, %65 : vector<8x128xf32>
      %99 = arith.mulf %79, %89 : vector<8x128xf32>
      %100 = arith.addf %98, %99 : vector<8x128xf32>
      %101 = math.tanh %100 : vector<8x128xf32>
      %102 = arith.mulf %97, %101 : vector<8x128xf32>
      %103 = arith.addi %0, %c1_i32_32 : i32
      %104 = vector.broadcast %103 : i32 to vector<8x128xi32>
      %105 = arith.cmpi slt, %104, %20 : vector<8x128xi32>
      %106 = arith.select %105, %102, %64 : vector<8x128xi1>, vector<8x128xf32>
      %107 = arith.select %105, %100, %65 : vector<8x128xi1>, vector<8x128xf32>
      %c2_i32 = arith.constant 2 : i32
      %c8_i32_45 = arith.constant 8 : i32
      %108 = arith.muli %c2_i32, %c8_i32_45 : i32
      %109 = arith.index_cast %108 : i32 to index
      %c0_46 = arith.constant 0 : index
      %110 = vector.load %arg10[%109, %c0_46] : memref<64x512xf32, #tpu.memory_space<vmem>>, vector<8x512xf32>
      %111 = arith.truncf %106 : vector<8x128xf32> to vector<8x128xbf16>
      %cst_47 = arith.constant dense<0.000000e+00> : vector<8x512xf32>
      %112 = tpu.matmul %111, %21, %cst_47 {dimension_numbers = #tpu.dot_dimension_numbers<[1], [0], [0], [1], [0, 0, 1, 1], [], []>} : vector<8x128xbf16>, vector<128x512xbf16>, vector<8x512xf32> -> vector<8x512xf32>
      %113 = arith.addf %110, %112 : vector<8x512xf32>
      %114 = vector.extract_strided_slice %113 {offsets = [0, 0], sizes = [8, 128], strides = [1, 1]} : vector<8x512xf32> to vector<8x128xf32>
      %cst_48 = arith.constant 5.000000e-01 : f32
      %115 = vector.broadcast %cst_48 : f32 to vector<8x128xf32>
      %116 = arith.mulf %115, %114 : vector<8x128xf32>
      %117 = math.tanh %116 : vector<8x128xf32>
      %cst_49 = arith.constant 1.000000e+00 : f32
      %118 = vector.broadcast %cst_49 : f32 to vector<8x128xf32>
      %119 = arith.addf %117, %118 : vector<8x128xf32>
      %cst_50 = arith.constant 5.000000e-01 : f32
      %120 = vector.broadcast %cst_50 : f32 to vector<8x128xf32>
      %121 = arith.mulf %120, %119 : vector<8x128xf32>
      %122 = vector.extract_strided_slice %113 {offsets = [0, 128], sizes = [8, 128], strides = [1, 1]} : vector<8x512xf32> to vector<8x128xf32>
      %cst_51 = arith.constant 5.000000e-01 : f32
      %123 = vector.broadcast %cst_51 : f32 to vector<8x128xf32>
      %124 = arith.mulf %123, %122 : vector<8x128xf32>
      %125 = math.tanh %124 : vector<8x128xf32>
      %cst_52 = arith.constant 1.000000e+00 : f32
      %126 = vector.broadcast %cst_52 : f32 to vector<8x128xf32>
      %127 = arith.addf %125, %126 : vector<8x128xf32>
      %cst_53 = arith.constant 5.000000e-01 : f32
      %128 = vector.broadcast %cst_53 : f32 to vector<8x128xf32>
      %129 = arith.mulf %128, %127 : vector<8x128xf32>
      %130 = vector.extract_strided_slice %113 {offsets = [0, 256], sizes = [8, 128], strides = [1, 1]} : vector<8x512xf32> to vector<8x128xf32>
      %131 = math.tanh %130 : vector<8x128xf32>
      %132 = vector.extract_strided_slice %113 {offsets = [0, 384], sizes = [8, 128], strides = [1, 1]} : vector<8x512xf32> to vector<8x128xf32>
      %cst_54 = arith.constant 5.000000e-01 : f32
      %133 = vector.broadcast %cst_54 : f32 to vector<8x128xf32>
      %134 = arith.mulf %133, %132 : vector<8x128xf32>
      %135 = math.tanh %134 : vector<8x128xf32>
      %cst_55 = arith.constant 1.000000e+00 : f32
      %136 = vector.broadcast %cst_55 : f32 to vector<8x128xf32>
      %137 = arith.addf %135, %136 : vector<8x128xf32>
      %cst_56 = arith.constant 5.000000e-01 : f32
      %138 = vector.broadcast %cst_56 : f32 to vector<8x128xf32>
      %139 = arith.mulf %138, %137 : vector<8x128xf32>
      %140 = arith.mulf %129, %107 : vector<8x128xf32>
      %141 = arith.mulf %121, %131 : vector<8x128xf32>
      %142 = arith.addf %140, %141 : vector<8x128xf32>
      %143 = math.tanh %142 : vector<8x128xf32>
      %144 = arith.mulf %139, %143 : vector<8x128xf32>
      %145 = arith.addi %0, %c2_i32 : i32
      %146 = vector.broadcast %145 : i32 to vector<8x128xi32>
      %147 = arith.cmpi slt, %146, %20 : vector<8x128xi32>
      %148 = arith.select %147, %144, %106 : vector<8x128xi1>, vector<8x128xf32>
      %149 = arith.select %147, %142, %107 : vector<8x128xi1>, vector<8x128xf32>
      %c3_i32 = arith.constant 3 : i32
      %c8_i32_57 = arith.constant 8 : i32
      %150 = arith.muli %c3_i32, %c8_i32_57 : i32
      %151 = arith.index_cast %150 : i32 to index
      %c0_58 = arith.constant 0 : index
      %152 = vector.load %arg10[%151, %c0_58] : memref<64x512xf32, #tpu.memory_space<vmem>>, vector<8x512xf32>
      %153 = arith.truncf %148 : vector<8x128xf32> to vector<8x128xbf16>
      %cst_59 = arith.constant dense<0.000000e+00> : vector<8x512xf32>
      %154 = tpu.matmul %153, %21, %cst_59 {dimension_numbers = #tpu.dot_dimension_numbers<[1], [0], [0], [1], [0, 0, 1, 1], [], []>} : vector<8x128xbf16>, vector<128x512xbf16>, vector<8x512xf32> -> vector<8x512xf32>
      %155 = arith.addf %152, %154 : vector<8x512xf32>
      %156 = vector.extract_strided_slice %155 {offsets = [0, 0], sizes = [8, 128], strides = [1, 1]} : vector<8x512xf32> to vector<8x128xf32>
      %cst_60 = arith.constant 5.000000e-01 : f32
      %157 = vector.broadcast %cst_60 : f32 to vector<8x128xf32>
      %158 = arith.mulf %157, %156 : vector<8x128xf32>
      %159 = math.tanh %158 : vector<8x128xf32>
      %cst_61 = arith.constant 1.000000e+00 : f32
      %160 = vector.broadcast %cst_61 : f32 to vector<8x128xf32>
      %161 = arith.addf %159, %160 : vector<8x128xf32>
      %cst_62 = arith.constant 5.000000e-01 : f32
      %162 = vector.broadcast %cst_62 : f32 to vector<8x128xf32>
      %163 = arith.mulf %162, %161 : vector<8x128xf32>
      %164 = vector.extract_strided_slice %155 {offsets = [0, 128], sizes = [8, 128], strides = [1, 1]} : vector<8x512xf32> to vector<8x128xf32>
      %cst_63 = arith.constant 5.000000e-01 : f32
      %165 = vector.broadcast %cst_63 : f32 to vector<8x128xf32>
      %166 = arith.mulf %165, %164 : vector<8x128xf32>
      %167 = math.tanh %166 : vector<8x128xf32>
      %cst_64 = arith.constant 1.000000e+00 : f32
      %168 = vector.broadcast %cst_64 : f32 to vector<8x128xf32>
      %169 = arith.addf %167, %168 : vector<8x128xf32>
      %cst_65 = arith.constant 5.000000e-01 : f32
      %170 = vector.broadcast %cst_65 : f32 to vector<8x128xf32>
      %171 = arith.mulf %170, %169 : vector<8x128xf32>
      %172 = vector.extract_strided_slice %155 {offsets = [0, 256], sizes = [8, 128], strides = [1, 1]} : vector<8x512xf32> to vector<8x128xf32>
      %173 = math.tanh %172 : vector<8x128xf32>
      %174 = vector.extract_strided_slice %155 {offsets = [0, 384], sizes = [8, 128], strides = [1, 1]} : vector<8x512xf32> to vector<8x128xf32>
      %cst_66 = arith.constant 5.000000e-01 : f32
      %175 = vector.broadcast %cst_66 : f32 to vector<8x128xf32>
      %176 = arith.mulf %175, %174 : vector<8x128xf32>
      %177 = math.tanh %176 : vector<8x128xf32>
      %cst_67 = arith.constant 1.000000e+00 : f32
      %178 = vector.broadcast %cst_67 : f32 to vector<8x128xf32>
      %179 = arith.addf %177, %178 : vector<8x128xf32>
      %cst_68 = arith.constant 5.000000e-01 : f32
      %180 = vector.broadcast %cst_68 : f32 to vector<8x128xf32>
      %181 = arith.mulf %180, %179 : vector<8x128xf32>
      %182 = arith.mulf %171, %149 : vector<8x128xf32>
      %183 = arith.mulf %163, %173 : vector<8x128xf32>
      %184 = arith.addf %182, %183 : vector<8x128xf32>
      %185 = math.tanh %184 : vector<8x128xf32>
      %186 = arith.mulf %181, %185 : vector<8x128xf32>
      %187 = arith.addi %0, %c3_i32 : i32
      %188 = vector.broadcast %187 : i32 to vector<8x128xi32>
      %189 = arith.cmpi slt, %188, %20 : vector<8x128xi32>
      %190 = arith.select %189, %186, %148 : vector<8x128xi1>, vector<8x128xf32>
      %191 = arith.select %189, %184, %149 : vector<8x128xi1>, vector<8x128xf32>
      %c4_i32 = arith.constant 4 : i32
      %c8_i32_69 = arith.constant 8 : i32
      %192 = arith.muli %c4_i32, %c8_i32_69 : i32
      %193 = arith.index_cast %192 : i32 to index
      %c0_70 = arith.constant 0 : index
      %194 = vector.load %arg10[%193, %c0_70] : memref<64x512xf32, #tpu.memory_space<vmem>>, vector<8x512xf32>
      %195 = arith.truncf %190 : vector<8x128xf32> to vector<8x128xbf16>
      %cst_71 = arith.constant dense<0.000000e+00> : vector<8x512xf32>
      %196 = tpu.matmul %195, %21, %cst_71 {dimension_numbers = #tpu.dot_dimension_numbers<[1], [0], [0], [1], [0, 0, 1, 1], [], []>} : vector<8x128xbf16>, vector<128x512xbf16>, vector<8x512xf32> -> vector<8x512xf32>
      %197 = arith.addf %194, %196 : vector<8x512xf32>
      %198 = vector.extract_strided_slice %197 {offsets = [0, 0], sizes = [8, 128], strides = [1, 1]} : vector<8x512xf32> to vector<8x128xf32>
      %cst_72 = arith.constant 5.000000e-01 : f32
      %199 = vector.broadcast %cst_72 : f32 to vector<8x128xf32>
      %200 = arith.mulf %199, %198 : vector<8x128xf32>
      %201 = math.tanh %200 : vector<8x128xf32>
      %cst_73 = arith.constant 1.000000e+00 : f32
      %202 = vector.broadcast %cst_73 : f32 to vector<8x128xf32>
      %203 = arith.addf %201, %202 : vector<8x128xf32>
      %cst_74 = arith.constant 5.000000e-01 : f32
      %204 = vector.broadcast %cst_74 : f32 to vector<8x128xf32>
      %205 = arith.mulf %204, %203 : vector<8x128xf32>
      %206 = vector.extract_strided_slice %197 {offsets = [0, 128], sizes = [8, 128], strides = [1, 1]} : vector<8x512xf32> to vector<8x128xf32>
      %cst_75 = arith.constant 5.000000e-01 : f32
      %207 = vector.broadcast %cst_75 : f32 to vector<8x128xf32>
      %208 = arith.mulf %207, %206 : vector<8x128xf32>
      %209 = math.tanh %208 : vector<8x128xf32>
      %cst_76 = arith.constant 1.000000e+00 : f32
      %210 = vector.broadcast %cst_76 : f32 to vector<8x128xf32>
      %211 = arith.addf %209, %210 : vector<8x128xf32>
      %cst_77 = arith.constant 5.000000e-01 : f32
      %212 = vector.broadcast %cst_77 : f32 to vector<8x128xf32>
      %213 = arith.mulf %212, %211 : vector<8x128xf32>
      %214 = vector.extract_strided_slice %197 {offsets = [0, 256], sizes = [8, 128], strides = [1, 1]} : vector<8x512xf32> to vector<8x128xf32>
      %215 = math.tanh %214 : vector<8x128xf32>
      %216 = vector.extract_strided_slice %197 {offsets = [0, 384], sizes = [8, 128], strides = [1, 1]} : vector<8x512xf32> to vector<8x128xf32>
      %cst_78 = arith.constant 5.000000e-01 : f32
      %217 = vector.broadcast %cst_78 : f32 to vector<8x128xf32>
      %218 = arith.mulf %217, %216 : vector<8x128xf32>
      %219 = math.tanh %218 : vector<8x128xf32>
      %cst_79 = arith.constant 1.000000e+00 : f32
      %220 = vector.broadcast %cst_79 : f32 to vector<8x128xf32>
      %221 = arith.addf %219, %220 : vector<8x128xf32>
      %cst_80 = arith.constant 5.000000e-01 : f32
      %222 = vector.broadcast %cst_80 : f32 to vector<8x128xf32>
      %223 = arith.mulf %222, %221 : vector<8x128xf32>
      %224 = arith.mulf %213, %191 : vector<8x128xf32>
      %225 = arith.mulf %205, %215 : vector<8x128xf32>
      %226 = arith.addf %224, %225 : vector<8x128xf32>
      %227 = math.tanh %226 : vector<8x128xf32>
      %228 = arith.mulf %223, %227 : vector<8x128xf32>
      %229 = arith.addi %0, %c4_i32 : i32
      %230 = vector.broadcast %229 : i32 to vector<8x128xi32>
      %231 = arith.cmpi slt, %230, %20 : vector<8x128xi32>
      %232 = arith.select %231, %228, %190 : vector<8x128xi1>, vector<8x128xf32>
      %233 = arith.select %231, %226, %191 : vector<8x128xi1>, vector<8x128xf32>
      %c5_i32 = arith.constant 5 : i32
      %c8_i32_81 = arith.constant 8 : i32
      %234 = arith.muli %c5_i32, %c8_i32_81 : i32
      %235 = arith.index_cast %234 : i32 to index
      %c0_82 = arith.constant 0 : index
      %236 = vector.load %arg10[%235, %c0_82] : memref<64x512xf32, #tpu.memory_space<vmem>>, vector<8x512xf32>
      %237 = arith.truncf %232 : vector<8x128xf32> to vector<8x128xbf16>
      %cst_83 = arith.constant dense<0.000000e+00> : vector<8x512xf32>
      %238 = tpu.matmul %237, %21, %cst_83 {dimension_numbers = #tpu.dot_dimension_numbers<[1], [0], [0], [1], [0, 0, 1, 1], [], []>} : vector<8x128xbf16>, vector<128x512xbf16>, vector<8x512xf32> -> vector<8x512xf32>
      %239 = arith.addf %236, %238 : vector<8x512xf32>
      %240 = vector.extract_strided_slice %239 {offsets = [0, 0], sizes = [8, 128], strides = [1, 1]} : vector<8x512xf32> to vector<8x128xf32>
      %cst_84 = arith.constant 5.000000e-01 : f32
      %241 = vector.broadcast %cst_84 : f32 to vector<8x128xf32>
      %242 = arith.mulf %241, %240 : vector<8x128xf32>
      %243 = math.tanh %242 : vector<8x128xf32>
      %cst_85 = arith.constant 1.000000e+00 : f32
      %244 = vector.broadcast %cst_85 : f32 to vector<8x128xf32>
      %245 = arith.addf %243, %244 : vector<8x128xf32>
      %cst_86 = arith.constant 5.000000e-01 : f32
      %246 = vector.broadcast %cst_86 : f32 to vector<8x128xf32>
      %247 = arith.mulf %246, %245 : vector<8x128xf32>
      %248 = vector.extract_strided_slice %239 {offsets = [0, 128], sizes = [8, 128], strides = [1, 1]} : vector<8x512xf32> to vector<8x128xf32>
      %cst_87 = arith.constant 5.000000e-01 : f32
      %249 = vector.broadcast %cst_87 : f32 to vector<8x128xf32>
      %250 = arith.mulf %249, %248 : vector<8x128xf32>
      %251 = math.tanh %250 : vector<8x128xf32>
      %cst_88 = arith.constant 1.000000e+00 : f32
      %252 = vector.broadcast %cst_88 : f32 to vector<8x128xf32>
      %253 = arith.addf %251, %252 : vector<8x128xf32>
      %cst_89 = arith.constant 5.000000e-01 : f32
      %254 = vector.broadcast %cst_89 : f32 to vector<8x128xf32>
      %255 = arith.mulf %254, %253 : vector<8x128xf32>
      %256 = vector.extract_strided_slice %239 {offsets = [0, 256], sizes = [8, 128], strides = [1, 1]} : vector<8x512xf32> to vector<8x128xf32>
      %257 = math.tanh %256 : vector<8x128xf32>
      %258 = vector.extract_strided_slice %239 {offsets = [0, 384], sizes = [8, 128], strides = [1, 1]} : vector<8x512xf32> to vector<8x128xf32>
      %cst_90 = arith.constant 5.000000e-01 : f32
      %259 = vector.broadcast %cst_90 : f32 to vector<8x128xf32>
      %260 = arith.mulf %259, %258 : vector<8x128xf32>
      %261 = math.tanh %260 : vector<8x128xf32>
      %cst_91 = arith.constant 1.000000e+00 : f32
      %262 = vector.broadcast %cst_91 : f32 to vector<8x128xf32>
      %263 = arith.addf %261, %262 : vector<8x128xf32>
      %cst_92 = arith.constant 5.000000e-01 : f32
      %264 = vector.broadcast %cst_92 : f32 to vector<8x128xf32>
      %265 = arith.mulf %264, %263 : vector<8x128xf32>
      %266 = arith.mulf %255, %233 : vector<8x128xf32>
      %267 = arith.mulf %247, %257 : vector<8x128xf32>
      %268 = arith.addf %266, %267 : vector<8x128xf32>
      %269 = math.tanh %268 : vector<8x128xf32>
      %270 = arith.mulf %265, %269 : vector<8x128xf32>
      %271 = arith.addi %0, %c5_i32 : i32
      %272 = vector.broadcast %271 : i32 to vector<8x128xi32>
      %273 = arith.cmpi slt, %272, %20 : vector<8x128xi32>
      %274 = arith.select %273, %270, %232 : vector<8x128xi1>, vector<8x128xf32>
      %275 = arith.select %273, %268, %233 : vector<8x128xi1>, vector<8x128xf32>
      %c6_i32 = arith.constant 6 : i32
      %c8_i32_93 = arith.constant 8 : i32
      %276 = arith.muli %c6_i32, %c8_i32_93 : i32
      %277 = arith.index_cast %276 : i32 to index
      %c0_94 = arith.constant 0 : index
      %278 = vector.load %arg10[%277, %c0_94] : memref<64x512xf32, #tpu.memory_space<vmem>>, vector<8x512xf32>
      %279 = arith.truncf %274 : vector<8x128xf32> to vector<8x128xbf16>
      %cst_95 = arith.constant dense<0.000000e+00> : vector<8x512xf32>
      %280 = tpu.matmul %279, %21, %cst_95 {dimension_numbers = #tpu.dot_dimension_numbers<[1], [0], [0], [1], [0, 0, 1, 1], [], []>} : vector<8x128xbf16>, vector<128x512xbf16>, vector<8x512xf32> -> vector<8x512xf32>
      %281 = arith.addf %278, %280 : vector<8x512xf32>
      %282 = vector.extract_strided_slice %281 {offsets = [0, 0], sizes = [8, 128], strides = [1, 1]} : vector<8x512xf32> to vector<8x128xf32>
      %cst_96 = arith.constant 5.000000e-01 : f32
      %283 = vector.broadcast %cst_96 : f32 to vector<8x128xf32>
      %284 = arith.mulf %283, %282 : vector<8x128xf32>
      %285 = math.tanh %284 : vector<8x128xf32>
      %cst_97 = arith.constant 1.000000e+00 : f32
      %286 = vector.broadcast %cst_97 : f32 to vector<8x128xf32>
      %287 = arith.addf %285, %286 : vector<8x128xf32>
      %cst_98 = arith.constant 5.000000e-01 : f32
      %288 = vector.broadcast %cst_98 : f32 to vector<8x128xf32>
      %289 = arith.mulf %288, %287 : vector<8x128xf32>
      %290 = vector.extract_strided_slice %281 {offsets = [0, 128], sizes = [8, 128], strides = [1, 1]} : vector<8x512xf32> to vector<8x128xf32>
      %cst_99 = arith.constant 5.000000e-01 : f32
      %291 = vector.broadcast %cst_99 : f32 to vector<8x128xf32>
      %292 = arith.mulf %291, %290 : vector<8x128xf32>
      %293 = math.tanh %292 : vector<8x128xf32>
      %cst_100 = arith.constant 1.000000e+00 : f32
      %294 = vector.broadcast %cst_100 : f32 to vector<8x128xf32>
      %295 = arith.addf %293, %294 : vector<8x128xf32>
      %cst_101 = arith.constant 5.000000e-01 : f32
      %296 = vector.broadcast %cst_101 : f32 to vector<8x128xf32>
      %297 = arith.mulf %296, %295 : vector<8x128xf32>
      %298 = vector.extract_strided_slice %281 {offsets = [0, 256], sizes = [8, 128], strides = [1, 1]} : vector<8x512xf32> to vector<8x128xf32>
      %299 = math.tanh %298 : vector<8x128xf32>
      %300 = vector.extract_strided_slice %281 {offsets = [0, 384], sizes = [8, 128], strides = [1, 1]} : vector<8x512xf32> to vector<8x128xf32>
      %cst_102 = arith.constant 5.000000e-01 : f32
      %301 = vector.broadcast %cst_102 : f32 to vector<8x128xf32>
      %302 = arith.mulf %301, %300 : vector<8x128xf32>
      %303 = math.tanh %302 : vector<8x128xf32>
      %cst_103 = arith.constant 1.000000e+00 : f32
      %304 = vector.broadcast %cst_103 : f32 to vector<8x128xf32>
      %305 = arith.addf %303, %304 : vector<8x128xf32>
      %cst_104 = arith.constant 5.000000e-01 : f32
      %306 = vector.broadcast %cst_104 : f32 to vector<8x128xf32>
      %307 = arith.mulf %306, %305 : vector<8x128xf32>
      %308 = arith.mulf %297, %275 : vector<8x128xf32>
      %309 = arith.mulf %289, %299 : vector<8x128xf32>
      %310 = arith.addf %308, %309 : vector<8x128xf32>
      %311 = math.tanh %310 : vector<8x128xf32>
      %312 = arith.mulf %307, %311 : vector<8x128xf32>
      %313 = arith.addi %0, %c6_i32 : i32
      %314 = vector.broadcast %313 : i32 to vector<8x128xi32>
      %315 = arith.cmpi slt, %314, %20 : vector<8x128xi32>
      %316 = arith.select %315, %312, %274 : vector<8x128xi1>, vector<8x128xf32>
      %317 = arith.select %315, %310, %275 : vector<8x128xi1>, vector<8x128xf32>
      %c7_i32 = arith.constant 7 : i32
      %c8_i32_105 = arith.constant 8 : i32
      %318 = arith.muli %c7_i32, %c8_i32_105 : i32
      %319 = arith.index_cast %318 : i32 to index
      %c0_106 = arith.constant 0 : index
      %320 = vector.load %arg10[%319, %c0_106] : memref<64x512xf32, #tpu.memory_space<vmem>>, vector<8x512xf32>
      %321 = arith.truncf %316 : vector<8x128xf32> to vector<8x128xbf16>
      %cst_107 = arith.constant dense<0.000000e+00> : vector<8x512xf32>
      %322 = tpu.matmul %321, %21, %cst_107 {dimension_numbers = #tpu.dot_dimension_numbers<[1], [0], [0], [1], [0, 0, 1, 1], [], []>} : vector<8x128xbf16>, vector<128x512xbf16>, vector<8x512xf32> -> vector<8x512xf32>
      %323 = arith.addf %320, %322 : vector<8x512xf32>
      %324 = vector.extract_strided_slice %323 {offsets = [0, 0], sizes = [8, 128], strides = [1, 1]} : vector<8x512xf32> to vector<8x128xf32>
      %cst_108 = arith.constant 5.000000e-01 : f32
      %325 = vector.broadcast %cst_108 : f32 to vector<8x128xf32>
      %326 = arith.mulf %325, %324 : vector<8x128xf32>
      %327 = math.tanh %326 : vector<8x128xf32>
      %cst_109 = arith.constant 1.000000e+00 : f32
      %328 = vector.broadcast %cst_109 : f32 to vector<8x128xf32>
      %329 = arith.addf %327, %328 : vector<8x128xf32>
      %cst_110 = arith.constant 5.000000e-01 : f32
      %330 = vector.broadcast %cst_110 : f32 to vector<8x128xf32>
      %331 = arith.mulf %330, %329 : vector<8x128xf32>
      %332 = vector.extract_strided_slice %323 {offsets = [0, 128], sizes = [8, 128], strides = [1, 1]} : vector<8x512xf32> to vector<8x128xf32>
      %cst_111 = arith.constant 5.000000e-01 : f32
      %333 = vector.broadcast %cst_111 : f32 to vector<8x128xf32>
      %334 = arith.mulf %333, %332 : vector<8x128xf32>
      %335 = math.tanh %334 : vector<8x128xf32>
      %cst_112 = arith.constant 1.000000e+00 : f32
      %336 = vector.broadcast %cst_112 : f32 to vector<8x128xf32>
      %337 = arith.addf %335, %336 : vector<8x128xf32>
      %cst_113 = arith.constant 5.000000e-01 : f32
      %338 = vector.broadcast %cst_113 : f32 to vector<8x128xf32>
      %339 = arith.mulf %338, %337 : vector<8x128xf32>
      %340 = vector.extract_strided_slice %323 {offsets = [0, 256], sizes = [8, 128], strides = [1, 1]} : vector<8x512xf32> to vector<8x128xf32>
      %341 = math.tanh %340 : vector<8x128xf32>
      %342 = vector.extract_strided_slice %323 {offsets = [0, 384], sizes = [8, 128], strides = [1, 1]} : vector<8x512xf32> to vector<8x128xf32>
      %cst_114 = arith.constant 5.000000e-01 : f32
      %343 = vector.broadcast %cst_114 : f32 to vector<8x128xf32>
      %344 = arith.mulf %343, %342 : vector<8x128xf32>
      %345 = math.tanh %344 : vector<8x128xf32>
      %cst_115 = arith.constant 1.000000e+00 : f32
      %346 = vector.broadcast %cst_115 : f32 to vector<8x128xf32>
      %347 = arith.addf %345, %346 : vector<8x128xf32>
      %cst_116 = arith.constant 5.000000e-01 : f32
      %348 = vector.broadcast %cst_116 : f32 to vector<8x128xf32>
      %349 = arith.mulf %348, %347 : vector<8x128xf32>
      %350 = arith.mulf %339, %317 : vector<8x128xf32>
      %351 = arith.mulf %331, %341 : vector<8x128xf32>
      %352 = arith.addf %350, %351 : vector<8x128xf32>
      %353 = math.tanh %352 : vector<8x128xf32>
      %354 = arith.mulf %349, %353 : vector<8x128xf32>
      %355 = arith.addi %0, %c7_i32 : i32
      %356 = vector.broadcast %355 : i32 to vector<8x128xi32>
      %357 = arith.cmpi slt, %356, %20 : vector<8x128xi32>
      %358 = arith.select %357, %354, %316 : vector<8x128xi1>, vector<8x128xf32>
      %359 = arith.select %357, %352, %317 : vector<8x128xi1>, vector<8x128xf32>
      %c8_i32_117 = arith.constant 8 : i32
      %c0_118 = arith.constant 0 : index
      %c0_119 = arith.constant 0 : index
      %360 = vector.load %arg11[%c0_118, %c0_119] : memref<8x128xf32, #tpu.memory_space<vmem>>, vector<8x128xf32>
      tpu.vector_store %arg11[%c0_118, %c0_119], %358 {strides = array<i32>} : memref<8x128xf32, #tpu.memory_space<vmem>>, vector<8x128xf32>,
      %c0_120 = arith.constant 0 : index
      %c0_121 = arith.constant 0 : index
      %361 = vector.load %arg12[%c0_120, %c0_121] : memref<8x128xf32, #tpu.memory_space<vmem>>, vector<8x128xf32>
      tpu.vector_store %arg12[%c0_120, %c0_121], %359 {strides = array<i32>} : memref<8x128xf32, #tpu.memory_space<vmem>>, vector<8x128xf32>,
    } else {
    }
    %c1_i32 = arith.constant 1 : i32
    %8 = arith.cmpi eq, %arg0, %c1_i32 : i32
    %9 = arith.extui %8 : i1 to i32
    %c0_i32_2 = arith.constant 0 : i32
    %10 = arith.cmpi ne, %9, %c0_i32_2 : i32
    scf.if %10 {
      %c0_3 = arith.constant 0 : index
      %c0_4 = arith.constant 0 : index
      %11 = vector.load %arg11[%c0_3, %c0_4] : memref<8x128xf32, #tpu.memory_space<vmem>>, vector<8x128xf32>
      %12 = arith.truncf %11 : vector<8x128xf32> to vector<8x128xbf16>
      %c0_5 = arith.constant 0 : index
      %c0_6 = arith.constant 0 : index
      %13 = vector.load %arg7[%c0_5, %c0_6] : memref<128x128xbf16, #tpu.memory_space<vmem>>, vector<128x128xbf16>
      %cst = arith.constant dense<0.000000e+00> : vector<8x128xf32>
      %14 = tpu.matmul %12, %13, %cst {dimension_numbers = #tpu.dot_dimension_numbers<[1], [0], [0], [1], [0, 0, 1, 1], [], []>} : vector<8x128xbf16>, vector<128x128xbf16>, vector<8x128xf32> -> vector<8x128xf32>
      %c0_7 = arith.constant 0 : index
      %c0_8 = arith.constant 0 : index
      %15 = vector.load %arg8[%c0_7, %c0_8] : memref<1x128xf32, #tpu.memory_space<vmem>>, vector<1x128xf32>
      %16 = vector.broadcast %15 : vector<1x128xf32> to vector<8x128xf32>
      %17 = arith.addf %14, %16 : vector<8x128xf32>
      %c0_9 = arith.constant 0 : index
      %c0_10 = arith.constant 0 : index
      %18 = vector.load %arg9[%c0_9, %c0_10] : memref<8x128xf32, #tpu.memory_space<vmem>>, vector<8x128xf32>
      tpu.vector_store %arg9[%c0_9, %c0_10], %17 {strides = array<i32>} : memref<8x128xf32, #tpu.memory_space<vmem>>, vector<8x128xf32>,
    } else {
    }
    return
  }
  func.func @transform_0(%arg0: i32, %arg1: memref<1xi32, #tpu.memory_space<smem>>) -> (i32, i32) {
    %c0_i32 = arith.constant 0 : i32
    %c0_i32_0 = arith.constant 0 : i32
    %c0_i32_1 = arith.constant 0 : i32
    return %c0_i32, %c0_i32_0 : i32, i32
  }
  func.func @transform_1(%arg0: i32, %arg1: memref<1xi32, #tpu.memory_space<smem>>) -> (i32, i32) {
    %c0_i32 = arith.constant 0 : i32
    %c0_i32_0 = arith.constant 0 : i32
    return %arg0, %c0_i32 : i32, i32
  }
  func.func @transform_2(%arg0: i32, %arg1: memref<1xi32, #tpu.memory_space<smem>>) -> (i32, i32) {
    %c0_i32 = arith.constant 0 : i32
    %c0_i32_0 = arith.constant 0 : i32
    %c0_i32_1 = arith.constant 0 : i32
    return %c0_i32, %c0_i32_0 : i32, i32
  }
  func.func @transform_3(%arg0: i32, %arg1: memref<1xi32, #tpu.memory_space<smem>>) -> (i32, i32) {
    %c0_i32 = arith.constant 0 : i32
    %c0_i32_0 = arith.constant 0 : i32
    %c0_i32_1 = arith.constant 0 : i32
    return %c0_i32, %c0_i32_0 : i32, i32
  }
  func.func @transform_4(%arg0: i32, %arg1: memref<1xi32, #tpu.memory_space<smem>>) -> (i32, i32) {
    %c0_i32 = arith.constant 0 : i32
    %c0_i32_0 = arith.constant 0 : i32
    %c0_i32_1 = arith.constant 0 : i32
    return %c0_i32, %c0_i32_0 : i32, i32
  }
  func.func @transform_5(%arg0: i32, %arg1: memref<1xi32, #tpu.memory_space<smem>>) -> (i32, i32) {
    %c0_i32 = arith.constant 0 : i32
    %c0_i32_0 = arith.constant 0 : i32
    %c0_i32_1 = arith.constant 0 : i32
    return %c0_i32, %c0_i32_0 : i32, i32
  }
  func.func @transform_6(%arg0: i32, %arg1: memref<1xi32, #tpu.memory_space<smem>>) -> (i32, i32) {
    %c0_i32 = arith.constant 0 : i32
    %c0_i32_0 = arith.constant 0 : i32
    %c0_i32_1 = arith.constant 0 : i32
    return %c0_i32, %c0_i32_0 : i32, i32
  }
  func.func @transform_7(%arg0: i32, %arg1: memref<1xi32, #tpu.memory_space<smem>>) -> (i32, i32) {
    %c0_i32 = arith.constant 0 : i32
    %c0_i32_0 = arith.constant 0 : i32
    %c0_i32_1 = arith.constant 0 : i32
    return %c0_i32, %c0_i32_0 : i32, i32
  }
}

</mosaic_0001>

<llo_original>
// kernel: lstm_forward.1
$region0: #{lstm_forward.1}
  #allocation0 [shape = 'u32[]', space=smem, size = 0x4, offset = 0x4, fixed_abs, tag = 'smem constant byte address 0x4 - core index']
  #allocation1 [shape = 'u32[144,128]{1,0:T(1,128)}', space=vmem, size = 0x12000, scoped, tag = 'internal scratch']
  #allocation2 [shape = 'f32[64,512]{1,0:T(8,128)}', space=vmem, size = 0x20000, scoped, tag = 'scratch operand']
  #allocation3 [shape = 'f32[8,128]{1,0:T(8,128)}', space=vmem, size = 0x1000, scoped, tag = 'scratch operand']
  #allocation4 [shape = 'f32[8,128]{1,0:T(8,128)}', space=vmem, size = 0x1000, scoped, tag = 'scratch operand']
  #allocation5 [shape = 's32[1]{0}', space=sflag, size = 0x4, scoped, tag = 'scoped memory for lstm_forward.1']
  #allocation6 [shape = 's32[1]{0:T(128)S(6)}', space=smem, size = 0x200, scoped, tag = 'prefetched SMEM operand 0']
  %s0 = inlined_call_operand.<no memory space> [shape: s32[1], index: 0, kind: input, shape index: {}]
  %s1 = inlined_call_operand.vmem [shape: s32[8,1], index: 1, kind: input, shape index: {}]
  %s2 = inlined_call_operand.vmem [shape: bf16[128,128], index: 2, kind: input, shape index: {}]
  %s3 = inlined_call_operand.vmem [shape: bf16[128,512], index: 3, kind: input, shape index: {}]
  %s4 = inlined_call_operand.vmem [shape: bf16[128,512], index: 4, kind: input, shape index: {}]
  %s5 = inlined_call_operand.vmem [shape: f32[1,512], index: 5, kind: input, shape index: {}]
  %s6 = inlined_call_operand.vmem [shape: bf16[128,128], index: 6, kind: input, shape index: {}]
  %s7 = inlined_call_operand.vmem [shape: f32[1,128], index: 7, kind: input, shape index: {}]
  %s8 = inlined_call_operand.vmem [shape: f32[8,128], index: 8, kind: output, shape index: {}]
  %s9 = sld [smem:[#allocation0]]
  $region73: #{lstm_forward.1} parent=0
    _
  %s11 = ssub.s32 1, %s9
  %s12 = scalar_select 0, %s11, %s9
  %13 = sst [smem:[#allocation6]] %s0
  loop: start=0, step=1, limit=4
  $region2: #{lstm_forward.1} parent=0 // loop_pre_header
    _
  $region3: #{lstm_forward.1} parent=0 // loop_header
    %s15 = sphi 0, %s19
    %p16 = scmp.ge.s32.totalorder %s15, 4
    %s23 = sphi 0, %s23
    %s25 = sphi 0, %s23
    %s26 = sphi 0, %s25
    %s40 = sphi 0, %s26
    %s46 = sphi 0, %s48
    %s49 = sphi 0, %s46
    %s50 = sphi 0, %s49
    %s66 = sphi 0, %s50
    %s70 = sphi 0, %s70
    %s72 = sphi 0, %s70
    %s73 = sphi 0, %s72
    %s87 = sphi 0, %s73
    %s91 = sphi 0, %s91
    %s93 = sphi 0, %s91
    %s94 = sphi 0, %s93
    %s108 = sphi 0, %s94
    %s112 = sphi 0, %s112
    %s114 = sphi 0, %s112
    %s115 = sphi 0, %s114
    %s129 = sphi 0, %s115
    %s133 = sphi 0, %s133
    %s135 = sphi 0, %s133
    %s136 = sphi 0, %s135
    %s150 = sphi 0, %s136
    %s154 = sphi 0, %s154
    %s156 = sphi 0, %s154
    %s157 = sphi 0, %s156
    %s171 = sphi 0, %s157
    %s175 = sphi 0, %s175
    %s177 = sphi 0, %s175
    %s178 = sphi 0, %s177
    %s192 = sphi 0, %s178
  $region4: #{lstm_forward.1} parent=0 // loop_header_branch
    %18 = sbr.rel (%p16) target = $region8
  $region5: #{lstm_forward.1} parent=0 // loop_body
    %s20 = ssub.s32 %s15, 1
    %s21 = ssub.s32 %s15, 2
    %s22 = sadd.s32 %s15, 1
    %s24 = sadd.s32 %s23, 1
    %p27 = scmp.eq.s32.totalorder %s15, 1
    %p28 = scmp.ne.s32.totalorder %s23, %s25
    %p29 = scmp.eq.s32.totalorder %s15, 0
    %p30 = por %p28, %p29
    %p31 = scmp.ne.s32.totalorder %s23, %s25
    %p32 = scmp.eq.s32.totalorder %s20, 1
    %p33 = por %p31, %p32
    %p34 = scmp.ne.s32.totalorder %s25, %s26
    %p35 = scmp.eq.s32.totalorder %s20, 0
    %p36 = por %p34, %p35
    %p37 = scmp.ne.s32.totalorder %s25, %s26
    %p38 = scmp.eq.s32.totalorder %s21, 1
    %p39 = por %p37, %p38
    %p41 = scmp.ne.s32.totalorder %s26, %s40
    %p42 = scmp.eq.s32.totalorder %s21, 0
    %p43 = por %p41, %p42
    %s44 = ssub.s32 %s15, %s22
    %p45 = scmp.eq.s32.totalorder %s44, 0
    %s47 = sadd.s32 %s46, 1
    %s48 = scalar_select %p45, %s46, %s47
    %p51 = pneg %p45
    %p52 = scmp.eq.s32.totalorder %s15, 1
    %p53 = por %p51, %p52
    %p54 = scmp.ne.s32.totalorder %s46, %s49
    %p55 = scmp.eq.s32.totalorder %s15, 0
    %p56 = por %p54, %p55
    %p57 = scmp.ne.s32.totalorder %s46, %s49
    %p58 = scmp.eq.s32.totalorder %s20, 1
    %p59 = por %p57, %p58
    %p60 = scmp.ne.s32.totalorder %s49, %s50
    %p61 = scmp.eq.s32.totalorder %s20, 0
    %p62 = por %p60, %p61
    %p63 = scmp.ne.s32.totalorder %s49, %s50
    %p64 = scmp.eq.s32.totalorder %s21, 1
    %p65 = por %p63, %p64
    %p67 = scmp.ne.s32.totalorder %s50, %s66
    %p68 = scmp.eq.s32.totalorder %s21, 0
    %p69 = por %p67, %p68
    %s71 = sadd.s32 %s70, 1
    %p74 = scmp.eq.s32.totalorder %s15, 1
    %p75 = scmp.ne.s32.totalorder %s70, %s72
    %p76 = scmp.eq.s32.totalorder %s15, 0
    %p77 = por %p75, %p76
    %p78 = scmp.ne.s32.totalorder %s70, %s72
    %p79 = scmp.eq.s32.totalorder %s20, 1
    %p80 = por %p78, %p79
    %p81 = scmp.ne.s32.totalorder %s72, %s73
    %p82 = scmp.eq.s32.totalorder %s20, 0
    %p83 = por %p81, %p82
    %p84 = scmp.ne.s32.totalorder %s72, %s73
    %p85 = scmp.eq.s32.totalorder %s21, 1
    %p86 = por %p84, %p85
    %p88 = scmp.ne.s32.totalorder %s73, %s87
    %p89 = scmp.eq.s32.totalorder %s21, 0
    %p90 = por %p88, %p89
    %s92 = sadd.s32 %s91, 1
    %p95 = scmp.eq.s32.totalorder %s15, 1
    %p96 = scmp.ne.s32.totalorder %s91, %s93
    %p97 = scmp.eq.s32.totalorder %s15, 0
    %p98 = por %p96, %p97
    %p99 = scmp.ne.s32.totalorder %s91, %s93
    %p100 = scmp.eq.s32.totalorder %s20, 1
    %p101 = por %p99, %p100
    %p102 = scmp.ne.s32.totalorder %s93, %s94
    %p103 = scmp.eq.s32.totalorder %s20, 0
    %p104 = por %p102, %p103
    %p105 = scmp.ne.s32.totalorder %s93, %s94
    %p106 = scmp.eq.s32.totalorder %s21, 1
    %p107 = por %p105, %p106
    %p109 = scmp.ne.s32.totalorder %s94, %s108
    %p110 = scmp.eq.s32.totalorder %s21, 0
    %p111 = por %p109, %p110
    %s113 = sadd.s32 %s112, 1
    %p116 = scmp.eq.s32.totalorder %s15, 1
    %p117 = scmp.ne.s32.totalorder %s112, %s114
    %p118 = scmp.eq.s32.totalorder %s15, 0
    %p119 = por %p117, %p118
    %p120 = scmp.ne.s32.totalorder %s112, %s114
    %p121 = scmp.eq.s32.totalorder %s20, 1
    %p122 = por %p120, %p121
    %p123 = scmp.ne.s32.totalorder %s114, %s115
    %p124 = scmp.eq.s32.totalorder %s20, 0
    %p125 = por %p123, %p124
    %p126 = scmp.ne.s32.totalorder %s114, %s115
    %p127 = scmp.eq.s32.totalorder %s21, 1
    %p128 = por %p126, %p127
    %p130 = scmp.ne.s32.totalorder %s115, %s129
    %p131 = scmp.eq.s32.totalorder %s21, 0
    %p132 = por %p130, %p131
    %s134 = sadd.s32 %s133, 1
    %p137 = scmp.eq.s32.totalorder %s15, 1
    %p138 = scmp.ne.s32.totalorder %s133, %s135
    %p139 = scmp.eq.s32.totalorder %s15, 0
    %p140 = por %p138, %p139
    %p141 = scmp.ne.s32.totalorder %s133, %s135
    %p142 = scmp.eq.s32.totalorder %s20, 1
    %p143 = por %p141, %p142
    %p144 = scmp.ne.s32.totalorder %s135, %s136
    %p145 = scmp.eq.s32.totalorder %s20, 0
    %p146 = por %p144, %p145
    %p147 = scmp.ne.s32.totalorder %s135, %s136
    %p148 = scmp.eq.s32.totalorder %s21, 1
    %p149 = por %p147, %p148
    %p151 = scmp.ne.s32.totalorder %s136, %s150
    %p152 = scmp.eq.s32.totalorder %s21, 0
    %p153 = por %p151, %p152
    %s155 = sadd.s32 %s154, 1
    %p158 = scmp.eq.s32.totalorder %s15, 1
    %p159 = scmp.ne.s32.totalorder %s154, %s156
    %p160 = scmp.eq.s32.totalorder %s15, 0
    %p161 = por %p159, %p160
    %p162 = scmp.ne.s32.totalorder %s154, %s156
    %p163 = scmp.eq.s32.totalorder %s20, 1
    %p164 = por %p162, %p163
    %p165 = scmp.ne.s32.totalorder %s156, %s157
    %p166 = scmp.eq.s32.totalorder %s20, 0
    %p167 = por %p165, %p166
    %p168 = scmp.ne.s32.totalorder %s156, %s157
    %p169 = scmp.eq.s32.totalorder %s21, 1
    %p170 = por %p168, %p169
    %p172 = scmp.ne.s32.totalorder %s157, %s171
    %p173 = scmp.eq.s32.totalorder %s21, 0
    %p174 = por %p172, %p173
    %s176 = sadd.s32 %s175, 1
    %p179 = scmp.eq.s32.totalorder %s15, 1
    %p180 = scmp.ne.s32.totalorder %s175, %s177
    %p181 = scmp.eq.s32.totalorder %s15, 0
    %p182 = por %p180, %p181
    %p183 = scmp.ne.s32.totalorder %s175, %s177
    %p184 = scmp.eq.s32.totalorder %s20, 1
    %p185 = por %p183, %p184
    %p186 = scmp.ne.s32.totalorder %s177, %s178
    %p187 = scmp.eq.s32.totalorder %s20, 0
    %p188 = por %p186, %p187
    %p189 = scmp.ne.s32.totalorder %s177, %s178
    %p190 = scmp.eq.s32.totalorder %s21, 1
    %p191 = por %p189, %p190
    %p193 = scmp.ne.s32.totalorder %s178, %s192
    %p194 = scmp.eq.s32.totalorder %s21, 0
    %p195 = por %p193, %p194
    %p196 = scmp.le.s32.totalorder 1, %s15
    %p197 = scmp.lt.s32.totalorder %s15, 3
    %p198 = pnand %p196, %p197
    %p199 = pneg %p198
    // Predicated region
    $region9: #{lstm_forward.1} parent=5 // pred_check
      _
    $region10: #{lstm_forward.1} parent=5 // pred_check_branch
      %201 = sbr.rel (%p198) target = $region12
    $region11: #{lstm_forward.1} parent=5 // pred_region
      %s202 = ssub.s32 %s15, 1
      // Predicated region
      $region13: #{lstm_forward.1} parent=11 // pred_check
        %p203 = pneg %p36
      $region14: #{lstm_forward.1} parent=11 // pred_check_branch
        %205 = sbr.rel (%p203) target = $region16
      $region15: #{lstm_forward.1} parent=11 // pred_region
        _
      $region16: #{lstm_forward.1} parent=11 // pred_fallthru
        _
      // Predicated region
      $region17: #{lstm_forward.1} parent=11 // pred_check
        %p206 = pneg %p83
      $region18: #{lstm_forward.1} parent=11 // pred_check_branch
        %208 = sbr.rel (%p206) target = $region20
      $region19: #{lstm_forward.1} parent=11 // pred_region
        _
      $region20: #{lstm_forward.1} parent=11 // pred_fallthru
        _
      // Predicated region
      $region21: #{lstm_forward.1} parent=11 // pred_check
        %p209 = pneg %p104
      $region22: #{lstm_forward.1} parent=11 // pred_check_branch
        %211 = sbr.rel (%p209) target = $region24
      $region23: #{lstm_forward.1} parent=11 // pred_region
        _
      $region24: #{lstm_forward.1} parent=11 // pred_fallthru
        _
      // Predicated region
      $region25: #{lstm_forward.1} parent=11 // pred_check
        %p212 = pneg %p125
      $region26: #{lstm_forward.1} parent=11 // pred_check_branch
        %214 = sbr.rel (%p212) target = $region28
      $region27: #{lstm_forward.1} parent=11 // pred_region
        _
      $region28: #{lstm_forward.1} parent=11 // pred_fallthru
        _
      // Predicated region
      $region29: #{lstm_forward.1} parent=11 // pred_check
        %p215 = pneg %p146
      $region30: #{lstm_forward.1} parent=11 // pred_check_branch
        %217 = sbr.rel (%p215) target = $region32
      $region31: #{lstm_forward.1} parent=11 // pred_region
        _
      $region32: #{lstm_forward.1} parent=11 // pred_fallthru
        _
      // Predicated region
      $region33: #{lstm_forward.1} parent=11 // pred_check
        %p218 = pneg %p167
      $region34: #{lstm_forward.1} parent=11 // pred_check_branch
        %220 = sbr.rel (%p218) target = $region36
      $region35: #{lstm_forward.1} parent=11 // pred_region
        _
      $region36: #{lstm_forward.1} parent=11 // pred_fallthru
        _
    $region12: #{lstm_forward.1} parent=5 // pred_fallthru
      _
    %p221 = scmp.lt.s32.totalorder %s15, 2
    // Predicated region
    $region37: #{lstm_forward.1} parent=5 // pred_check
      %p222 = pneg %p221
    $region38: #{lstm_forward.1} parent=5 // pred_check_branch
      %224 = sbr.rel (%p222) target = $region40
    $region39: #{lstm_forward.1} parent=5 // pred_region
      // Predicated region
      $region41: #{lstm_forward.1} parent=39 // pred_check
        %p225 = pneg %p56
      $region42: #{lstm_forward.1} parent=39 // pred_check_branch
        %227 = sbr.rel (%p225) target = $region44
      $region43: #{lstm_forward.1} parent=39 // pred_region
        %s228 = smul.u32 8, %s15
        %p229 = scmp.lt.s32.totalorder %s228, 15
        %s230 = scalar_select %p229, %s228, 15
        %s231 = smul.addr %s230, 4
        %s232 = scalar_lea.vmem %s2, %s231
        %s233 = smul.u32 8, %s15
      $region44: #{lstm_forward.1} parent=39 // pred_fallthru
        _
    $region40: #{lstm_forward.1} parent=5 // pred_fallthru
      _
    %p234 = scmp.le.s32.totalorder 1, %s15
    %p235 = scmp.lt.s32.totalorder %s15, 3
    %p236 = pnand %p234, %p235
    %p237 = pneg %p236
    // Predicated region
    $region45: #{lstm_forward.1} parent=5 // pred_check
      _
    $region46: #{lstm_forward.1} parent=5 // pred_check_branch
      %239 = sbr.rel (%p236) target = $region48
    $region47: #{lstm_forward.1} parent=5 // pred_region
      %s240 = ssub.s32 %s15, 1
      %p241 = pneg %p36
      %p242 = pneg %p33
      %s243 = smul.u32 8, %s20
      %p244 = scmp.lt.s32.totalorder %s243, 15
      %s245 = scalar_select %p244, %s243, 15
      %s246 = smul.addr %s245, 4
      %s247 = scalar_lea.vmem %s2, %s246
      %p248 = pneg %p62
      %p249 = pneg %p59
      %p250 = pneg %p83
      %p251 = pneg %p80
      %p252 = pneg %p104
      %p253 = pneg %p101
      %p254 = pneg %p125
      %p255 = pneg %p122
      %p256 = pneg %p146
      %p257 = pneg %p143
      %p258 = pneg %p167
      %p259 = pneg %p164
      %p260 = pneg %p188
      %p261 = pneg %p185
      %s262 = smul.u32 8, %s20
      %p263 = scmp.lt.s32.totalorder %s262, 15
      %s264 = scalar_select %p263, %s262, 15
      %s265 = smul.addr %s264, 4
      %s266 = scalar_lea.vmem %s2, %s265
      %s267 = smul.u32 8, %s20
      %s269 = smul.u32 %s20, 8
      %s270 = sld [smem:[#allocation6]]
      %p271 = scmp.eq.s32.totalorder %s20, 0
      // Predicated region
      $region49: #{lstm_forward.1} parent=47 // pred_check
        %p272 = pneg %p271
      $region50: #{lstm_forward.1} parent=47 // pred_check_branch
        %274 = sbr.rel (%p272) target = $region52
      $region51: #{lstm_forward.1} parent=47 // pred_region
        %275 = vst [vmem:[#allocation3] sm:$0xff] 0.0
        %276 = vst [vmem:[#allocation4] sm:$0xff] 0.0
      $region52: #{lstm_forward.1} parent=47 // pred_fallthru
        _
      %p277 = scmp.lt.s32.totalorder %s269, %s270
      // Predicated region
      $region53: #{lstm_forward.1} parent=47 // pred_check
        %p278 = pneg %p277
      $region54: #{lstm_forward.1} parent=47 // pred_check_branch
        %280 = sbr.rel (%p278) target = $region56
      $region55: #{lstm_forward.1} parent=47 // pred_region
        %v281 = vld [vmem:[%s266] sm:$0xf]
        %v282 = vld [vmem:[%s266 + $0x4] sm:$0xf]
        %v283 = vld [vmem:[%s266 + $0x8] sm:$0xf]
        %v284 = vld [vmem:[%s266 + $0xc] sm:$0xf]
        %v285 = vld [vmem:[%s266 + $0x10] sm:$0xf]
        %v286 = vld [vmem:[%s266 + $0x14] sm:$0xf]
        %v287 = vld [vmem:[%s266 + $0x18] sm:$0xf]
        %v288 = vld [vmem:[%s266 + $0x1c] sm:$0xf]
        %v289 = vld [vmem:[%s3] sm:$0xff]
        %v290 = vld [vmem:[%s3 + $0x8] sm:$0xff]
        %v291 = vld [vmem:[%s3 + $0x10] sm:$0xff]
        %v292 = vld [vmem:[%s3 + $0x18] sm:$0xff]
        %v293 = vld [vmem:[%s3 + $0x20] sm:$0xff]
        %v294 = vld [vmem:[%s3 + $0x28] sm:$0xff]
        %v295 = vld [vmem:[%s3 + $0x30] sm:$0xff]
        %v296 = vld [vmem:[%s3 + $0x38] sm:$0xff]
        %v297 = vld [vmem:[%s3 + $0x40] sm:$0xff]
        %v298 = vld [vmem:[%s3 + $0x48] sm:$0xff]
        %v299 = vld [vmem:[%s3 + $0x50] sm:$0xff]
        %v300 = vld [vmem:[%s3 + $0x58] sm:$0xff]
        %v301 = vld [vmem:[%s3 + $0x60] sm:$0xff]
        %v302 = vld [vmem:[%s3 + $0x68] sm:$0xff]
        %v303 = vld [vmem:[%s3 + $0x70] sm:$0xff]
        %v304 = vld [vmem:[%s3 + $0x78] sm:$0xff]
        %v305 = vld [vmem:[%s3 + $0x80] sm:$0xff]
        %v306 = vld [vmem:[%s3 + $0x88] sm:$0xff]
        %v307 = vld [vmem:[%s3 + $0x90] sm:$0xff]
        %v308 = vld [vmem:[%s3 + $0x98] sm:$0xff]
        %v309 = vld [vmem:[%s3 + $0xa0] sm:$0xff]
        %v310 = vld [vmem:[%s3 + $0xa8] sm:$0xff]
        %v311 = vld [vmem:[%s3 + $0xb0] sm:$0xff]
        %v312 = vld [vmem:[%s3 + $0xb8] sm:$0xff]
        %v313 = vld [vmem:[%s3 + $0xc0] sm:$0xff]
        %v314 = vld [vmem:[%s3 + $0xc8] sm:$0xff]
        %v315 = vld [vmem:[%s3 + $0xd0] sm:$0xff]
        %v316 = vld [vmem:[%s3 + $0xd8] sm:$0xff]
        %v317 = vld [vmem:[%s3 + $0xe0] sm:$0xff]
        %v318 = vld [vmem:[%s3 + $0xe8] sm:$0xff]
        %v319 = vld [vmem:[%s3 + $0xf0] sm:$0xff]
        %v320 = vld [vmem:[%s3 + $0xf8] sm:$0xff]
        %v321 = vld [vmem:[%s5] sm:$0xf]
        %v323 = vlaneseq
        %v324 = vshrl.u32 %v323, 7
        %v325 = vsub.s32 0, %v324
        %v326 = vrot.slane %v321, %v325
        %v327 = vlaneseq
        %v328 = vshrl.u32 %v327, 7
        %v329 = vsub.s32 1, %v328
        %v330 = vrot.slane %v321, %v329
        %v331 = vlaneseq
        %v332 = vshrl.u32 %v331, 7
        %v333 = vsub.s32 2, %v332
        %v334 = vrot.slane %v321, %v333
        %v335 = vlaneseq
        %v336 = vshrl.u32 %v335, 7
        %v337 = vsub.s32 3, %v336
        %v338 = vrot.slane %v321, %v337
        %v351 = vunpack.c.l.b16 %v281
        %v352 = vunpack.c.l.b16 %v282
        %v353 = vunpack.c.l.b16 %v283
        %v354 = vunpack.c.l.b16 %v284
        %v355 = vunpack.c.l.b16 %v285
        %v356 = vunpack.c.l.b16 %v286
        %v357 = vunpack.c.l.b16 %v287
        %v358 = vunpack.c.l.b16 %v288
        %v359 = vpack.c.b16 %v352, %v351
        %v360 = vpack.c.b16 %v354, %v353
        %v361 = vpack.c.b16 %v356, %v355
        %v362 = vpack.c.b16 %v358, %v357
        %v399 = vunpack.c.l.b16 %v289
        %v400 = vunpack.c.h.b16 %v289
        %v401 = vunpack.c.l.b16 %v290
        %v402 = vunpack.c.h.b16 %v290
        %v403 = vunpack.c.l.b16 %v291
        %v404 = vunpack.c.h.b16 %v291
        %v405 = vunpack.c.l.b16 %v292
        %v406 = vunpack.c.h.b16 %v292
        %v407 = vunpack.c.l.b16 %v293
        %v408 = vunpack.c.h.b16 %v293
        %v409 = vunpack.c.l.b16 %v294
        %v410 = vunpack.c.h.b16 %v294
        %v411 = vunpack.c.l.b16 %v295
        %v412 = vunpack.c.h.b16 %v295
        %v413 = vunpack.c.l.b16 %v296
        %v414 = vunpack.c.h.b16 %v296
        %v415 = vunpack.c.l.b16 %v297
        %v416 = vunpack.c.h.b16 %v297
        %v417 = vunpack.c.l.b16 %v298
        %v418 = vunpack.c.h.b16 %v298
        %v419 = vunpack.c.l.b16 %v299
        %v420 = vunpack.c.h.b16 %v299
        %v421 = vunpack.c.l.b16 %v300
        %v422 = vunpack.c.h.b16 %v300
        %v423 = vunpack.c.l.b16 %v301
        %v424 = vunpack.c.h.b16 %v301
        %v425 = vunpack.c.l.b16 %v302
        %v426 = vunpack.c.h.b16 %v302
        %v427 = vunpack.c.l.b16 %v303
        %v428 = vunpack.c.h.b16 %v303
        %v429 = vunpack.c.l.b16 %v304
        %v430 = vunpack.c.h.b16 %v304
        %v431 = vunpack.c.l.b16 %v305
        %v432 = vunpack.c.h.b16 %v305
        %v433 = vunpack.c.l.b16 %v306
        %v434 = vunpack.c.h.b16 %v306
        %v435 = vunpack.c.l.b16 %v307
        %v436 = vunpack.c.h.b16 %v307
        %v437 = vunpack.c.l.b16 %v308
        %v438 = vunpack.c.h.b16 %v308
        %v439 = vunpack.c.l.b16 %v309
        %v440 = vunpack.c.h.b16 %v309
        %v441 = vunpack.c.l.b16 %v310
        %v442 = vunpack.c.h.b16 %v310
        %v443 = vunpack.c.l.b16 %v311
        %v444 = vunpack.c.h.b16 %v311
        %v445 = vunpack.c.l.b16 %v312
        %v446 = vunpack.c.h.b16 %v312
        %v447 = vunpack.c.l.b16 %v313
        %v448 = vunpack.c.h.b16 %v313
        %v449 = vunpack.c.l.b16 %v314
        %v450 = vunpack.c.h.b16 %v314
        %v451 = vunpack.c.l.b16 %v315
        %v452 = vunpack.c.h.b16 %v315
        %v453 = vunpack.c.l.b16 %v316
        %v454 = vunpack.c.h.b16 %v316
        %v455 = vunpack.c.l.b16 %v317
        %v456 = vunpack.c.h.b16 %v317
        %v457 = vunpack.c.l.b16 %v318
        %v458 = vunpack.c.h.b16 %v318
        %v459 = vunpack.c.l.b16 %v319
        %v460 = vunpack.c.h.b16 %v319
        %v461 = vunpack.c.l.b16 %v320
        %v462 = vunpack.c.h.b16 %v320
        %v463 = vpack.c.b16 %v403, %v399
        %v464 = vpack.c.b16 %v404, %v400
        %v465 = vpack.c.b16 %v405, %v401
        %v466 = vpack.c.b16 %v406, %v402
        %v467 = vpack.c.b16 %v411, %v407
        %v468 = vpack.c.b16 %v412, %v408
        %v469 = vpack.c.b16 %v413, %v409
        %v470 = vpack.c.b16 %v414, %v410
        %v471 = vpack.c.b16 %v419, %v415
        %v472 = vpack.c.b16 %v420, %v416
        %v473 = vpack.c.b16 %v421, %v417
        %v474 = vpack.c.b16 %v422, %v418
        %v475 = vpack.c.b16 %v427, %v423
        %v476 = vpack.c.b16 %v428, %v424
        %v477 = vpack.c.b16 %v429, %v425
        %v478 = vpack.c.b16 %v430, %v426
        %v479 = vpack.c.b16 %v435, %v431
        %v480 = vpack.c.b16 %v436, %v432
        %v481 = vpack.c.b16 %v437, %v433
        %v482 = vpack.c.b16 %v438, %v434
        %v483 = vpack.c.b16 %v443, %v439
        %v484 = vpack.c.b16 %v444, %v440
        %v485 = vpack.c.b16 %v445, %v441
        %v486 = vpack.c.b16 %v446, %v442
        %v487 = vpack.c.b16 %v451, %v447
        %v488 = vpack.c.b16 %v452, %v448
        %v489 = vpack.c.b16 %v453, %v449
        %v490 = vpack.c.b16 %v454, %v450
        %v491 = vpack.c.b16 %v459, %v455
        %v492 = vpack.c.b16 %v460, %v456
        %v493 = vpack.c.b16 %v461, %v457
        %v494 = vpack.c.b16 %v462, %v458
        %527 = vmatprep.subr.bf16.mxu0 %v492
        %528 = vmatpush1.bf16.msra.mxu0 %v491
        %529 = vmatprep.subr.bf16.mxu0 %v488
        %530 = vmatpush1.bf16.msra.mxu0 %v487
        %531 = vmatprep.subr.bf16.mxu0 %v484
        %532 = vmatpush1.bf16.msra.mxu0 %v483
        %533 = vmatprep.subr.bf16.mxu0 %v480
        %534 = vmatpush1.bf16.msra.mxu0 %v479
        %535 = vmatprep.subr.bf16.mxu0 %v476
        %536 = vmatpush1.bf16.msra.mxu0 %v475
        %537 = vmatprep.subr.bf16.mxu0 %v472
        %538 = vmatpush1.bf16.msra.mxu0 %v471
        %539 = vmatprep.subr.bf16.mxu0 %v468
        %540 = vmatpush1.bf16.msra.mxu0 %v467
        %541 = vmatprep.subr.bf16.mxu0 %v464
        %542 = vmatpush1.bf16.msra.mxu0 %v463
        %543 = vmatprep.subr.bf16.mxu0 0
        %544 = vmatpush2.bf16.msra.mxu0 0
        %545 = vmatprep.subr.bf16.mxu0 0
        %546 = vmatpush2.bf16.msra.mxu0 0
        %547 = vmatprep.subr.bf16.mxu0 0
        %548 = vmatpush2.bf16.msra.mxu0 0
        %549 = vmatprep.subr.bf16.mxu0 0
        %550 = vmatpush2.bf16.msra.mxu0 0
        %551 = vmatprep.subr.bf16.mxu0 0
        %552 = vmatpush2.bf16.msra.mxu0 0
        %553 = vmatprep.subr.bf16.mxu0 0
        %554 = vmatpush2.bf16.msra.mxu0 0
        %555 = vmatprep.subr.bf16.mxu0 0
        %556 = vmatpush2.bf16.msra.mxu0 0
        %557 = vmatprep.subr.bf16.mxu0 0
        %558 = vmatpush2.bf16.msra.mxu0 0
        %559 = vmatprep.mubr.bf16.mxu0 0
        %560 = vmatmul.mubr.bf16.gmra.mxu0 %v359
        %v561 = vpop.f32.mrf.mxu0
        %v562 = vadd.f32 %v326, %v561
        %v563 = vpop.f32.mrf.mxu0
        %v564 = vadd.f32 %v330, %v563
        %v565 = vpop.f32.mrf.mxu0
        %v566 = vadd.f32 %v326, %v565
        %v567 = vpop.f32.mrf.mxu0
        %v568 = vadd.f32 %v330, %v567
        %569 = vmatprep.mubr.bf16.mxu0 0
        %570 = vmatmul.mubr.bf16.gmra.mxu0 %v360
        %v571 = vpop.f32.mrf.mxu0
        %v572 = vadd.f32 %v326, %v571
        %v573 = vpop.f32.mrf.mxu0
        %v574 = vadd.f32 %v330, %v573
        %v575 = vpop.f32.mrf.mxu0
        %v576 = vadd.f32 %v326, %v575
        %v577 = vpop.f32.mrf.mxu0
        %v578 = vadd.f32 %v330, %v577
        %579 = vmatprep.mubr.bf16.mxu0 0
        %580 = vmatmul.mubr.bf16.gmra.mxu0 %v361
        %v581 = vpop.f32.mrf.mxu0
        %v582 = vadd.f32 %v326, %v581
        %v583 = vpop.f32.mrf.mxu0
        %v584 = vadd.f32 %v330, %v583
        %v585 = vpop.f32.mrf.mxu0
        %v586 = vadd.f32 %v326, %v585
        %v587 = vpop.f32.mrf.mxu0
        %v588 = vadd.f32 %v330, %v587
        %589 = vmatprep.mubr.bf16.mxu0 0
        %590 = vmatmul.mubr.bf16.gmra.mxu0 %v362
        %v591 = vpop.f32.mrf.mxu0
        %v592 = vadd.f32 %v326, %v591
        %v593 = vpop.f32.mrf.mxu0
        %v594 = vadd.f32 %v330, %v593
        %v595 = vpop.f32.mrf.mxu0
        %v596 = vadd.f32 %v326, %v595
        %v597 = vpop.f32.mrf.mxu0
        %v598 = vadd.f32 %v330, %v597
        %599 = vdwg.mxu0
        %600 = vmatprep.subr.bf16.mxu0 %v494
        %601 = vmatpush1.bf16.msra.mxu0 %v493
        %602 = vmatprep.subr.bf16.mxu0 %v490
        %603 = vmatpush1.bf16.msra.mxu0 %v489
        %604 = vmatprep.subr.bf16.mxu0 %v486
        %605 = vmatpush1.bf16.msra.mxu0 %v485
        %606 = vmatprep.subr.bf16.mxu0 %v482
        %607 = vmatpush1.bf16.msra.mxu0 %v481
        %608 = vmatprep.subr.bf16.mxu0 %v478
        %609 = vmatpush1.bf16.msra.mxu0 %v477
        %610 = vmatprep.subr.bf16.mxu0 %v474
        %611 = vmatpush1.bf16.msra.mxu0 %v473
        %612 = vmatprep.subr.bf16.mxu0 %v470
        %613 = vmatpush1.bf16.msra.mxu0 %v469
        %614 = vmatprep.subr.bf16.mxu0 %v466
        %615 = vmatpush1.bf16.msra.mxu0 %v465
        %616 = vmatprep.subr.bf16.mxu0 0
        %617 = vmatpush2.bf16.msra.mxu0 0
        %618 = vmatprep.subr.bf16.mxu0 0
        %619 = vmatpush2.bf16.msra.mxu0 0
        %620 = vmatprep.subr.bf16.mxu0 0
        %621 = vmatpush2.bf16.msra.mxu0 0
        %622 = vmatprep.subr.bf16.mxu0 0
        %623 = vmatpush2.bf16.msra.mxu0 0
        %624 = vmatprep.subr.bf16.mxu0 0
        %625 = vmatpush2.bf16.msra.mxu0 0
        %626 = vmatprep.subr.bf16.mxu0 0
        %627 = vmatpush2.bf16.msra.mxu0 0
        %628 = vmatprep.subr.bf16.mxu0 0
        %629 = vmatpush2.bf16.msra.mxu0 0
        %630 = vmatprep.subr.bf16.mxu0 0
        %631 = vmatpush2.bf16.msra.mxu0 0
        %632 = vmatprep.mubr.bf16.mxu0 0
        %633 = vmatmul.mubr.bf16.gmra.mxu0 %v359
        %v634 = vpop.f32.mrf.mxu0
        %v635 = vadd.f32 %v334, %v634
        %v636 = vpop.f32.mrf.mxu0
        %v637 = vadd.f32 %v338, %v636
        %v638 = vpop.f32.mrf.mxu0
        %v639 = vadd.f32 %v334, %v638
        %v640 = vpop.f32.mrf.mxu0
        %v641 = vadd.f32 %v338, %v640
        %642 = vmatprep.mubr.bf16.mxu0 0
        %643 = vmatmul.mubr.bf16.gmra.mxu0 %v360
        %v644 = vpop.f32.mrf.mxu0
        %v645 = vadd.f32 %v334, %v644
        %v646 = vpop.f32.mrf.mxu0
        %v647 = vadd.f32 %v338, %v646
        %v648 = vpop.f32.mrf.mxu0
        %v649 = vadd.f32 %v334, %v648
        %v650 = vpop.f32.mrf.mxu0
        %v651 = vadd.f32 %v338, %v650
        %652 = vmatprep.mubr.bf16.mxu0 0
        %653 = vmatmul.mubr.bf16.gmra.mxu0 %v361
        %v654 = vpop.f32.mrf.mxu0
        %v655 = vadd.f32 %v334, %v654
        %v656 = vpop.f32.mrf.mxu0
        %v657 = vadd.f32 %v338, %v656
        %v658 = vpop.f32.mrf.mxu0
        %v659 = vadd.f32 %v334, %v658
        %v660 = vpop.f32.mrf.mxu0
        %v661 = vadd.f32 %v338, %v660
        %662 = vmatprep.mubr.bf16.mxu0 0
        %663 = vmatmul.mubr.bf16.gmra.mxu0 %v362
        %v664 = vpop.f32.mrf.mxu0
        %v665 = vadd.f32 %v334, %v664
        %v666 = vpop.f32.mrf.mxu0
        %v667 = vadd.f32 %v338, %v666
        %v668 = vpop.f32.mrf.mxu0
        %v669 = vadd.f32 %v334, %v668
        %v670 = vpop.f32.mrf.mxu0
        %v671 = vadd.f32 %v338, %v670
        %672 = vdwg.mxu0
        %673 = vst [vmem:[#allocation2] sm:$0xff] %v562
        %674 = vst [vmem:[#allocation2 + $0x8] sm:$0xff] %v564
        %675 = vst [vmem:[#allocation2 + $0x10] sm:$0xff] %v635
        %676 = vst [vmem:[#allocation2 + $0x18] sm:$0xff] %v637
        %677 = vst [vmem:[#allocation2 + $0x20] sm:$0xff] %v566
        %678 = vst [vmem:[#allocation2 + $0x28] sm:$0xff] %v568
        %679 = vst [vmem:[#allocation2 + $0x30] sm:$0xff] %v639
        %680 = vst [vmem:[#allocation2 + $0x38] sm:$0xff] %v641
        %681 = vst [vmem:[#allocation2 + $0x40] sm:$0xff] %v572
        %682 = vst [vmem:[#allocation2 + $0x48] sm:$0xff] %v574
        %683 = vst [vmem:[#allocation2 + $0x50] sm:$0xff] %v645
        %684 = vst [vmem:[#allocation2 + $0x58] sm:$0xff] %v647
        %685 = vst [vmem:[#allocation2 + $0x60] sm:$0xff] %v576
        %686 = vst [vmem:[#allocation2 + $0x68] sm:$0xff] %v578
        %687 = vst [vmem:[#allocation2 + $0x70] sm:$0xff] %v649
        %688 = vst [vmem:[#allocation2 + $0x78] sm:$0xff] %v651
        %689 = vst [vmem:[#allocation2 + $0x80] sm:$0xff] %v582
        %690 = vst [vmem:[#allocation2 + $0x88] sm:$0xff] %v584
        %691 = vst [vmem:[#allocation2 + $0x90] sm:$0xff] %v655
        %692 = vst [vmem:[#allocation2 + $0x98] sm:$0xff] %v657
        %693 = vst [vmem:[#allocation2 + $0xa0] sm:$0xff] %v586
        %694 = vst [vmem:[#allocation2 + $0xa8] sm:$0xff] %v588
        %695 = vst [vmem:[#allocation2 + $0xb0] sm:$0xff] %v659
        %696 = vst [vmem:[#allocation2 + $0xb8] sm:$0xff] %v661
        %697 = vst [vmem:[#allocation2 + $0xc0] sm:$0xff] %v592
        %698 = vst [vmem:[#allocation2 + $0xc8] sm:$0xff] %v594
        %699 = vst [vmem:[#allocation2 + $0xd0] sm:$0xff] %v665
        %700 = vst [vmem:[#allocation2 + $0xd8] sm:$0xff] %v667
        %701 = vst [vmem:[#allocation2 + $0xe0] sm:$0xff] %v596
        %702 = vst [vmem:[#allocation2 + $0xe8] sm:$0xff] %v598
        %703 = vst [vmem:[#allocation2 + $0xf0] sm:$0xff] %v669
        %704 = vst [vmem:[#allocation2 + $0xf8] sm:$0xff] %v671
        %v705 = vld [vmem:[%s1] sm:$0xff]
        %706 = vset.pattern.permute.xlu0 0
        %707 = vperm.xlu0 %706, %v705
        %v708 = vpop.permute.xlu0 %707
        %v709 = vld [vmem:[%s4] sm:$0xff]
        %v710 = vld [vmem:[%s4 + $0x8] sm:$0xff]
        %v711 = vld [vmem:[%s4 + $0x10] sm:$0xff]
        %v712 = vld [vmem:[%s4 + $0x18] sm:$0xff]
        %v713 = vld [vmem:[%s4 + $0x20] sm:$0xff]
        %v714 = vld [vmem:[%s4 + $0x28] sm:$0xff]
        %v715 = vld [vmem:[%s4 + $0x30] sm:$0xff]
        %v716 = vld [vmem:[%s4 + $0x38] sm:$0xff]
        %v717 = vld [vmem:[%s4 + $0x40] sm:$0xff]
        %v718 = vld [vmem:[%s4 + $0x48] sm:$0xff]
        %v719 = vld [vmem:[%s4 + $0x50] sm:$0xff]
        %v720 = vld [vmem:[%s4 + $0x58] sm:$0xff]
        %v721 = vld [vmem:[%s4 + $0x60] sm:$0xff]
        %v722 = vld [vmem:[%s4 + $0x68] sm:$0xff]
        %v723 = vld [vmem:[%s4 + $0x70] sm:$0xff]
        %v724 = vld [vmem:[%s4 + $0x78] sm:$0xff]
        %v725 = vld [vmem:[%s4 + $0x80] sm:$0xff]
        %v726 = vld [vmem:[%s4 + $0x88] sm:$0xff]
        %v727 = vld [vmem:[%s4 + $0x90] sm:$0xff]
        %v728 = vld [vmem:[%s4 + $0x98] sm:$0xff]
        %v729 = vld [vmem:[%s4 + $0xa0] sm:$0xff]
        %v730 = vld [vmem:[%s4 + $0xa8] sm:$0xff]
        %v731 = vld [vmem:[%s4 + $0xb0] sm:$0xff]
        %v732 = vld [vmem:[%s4 + $0xb8] sm:$0xff]
        %v733 = vld [vmem:[%s4 + $0xc0] sm:$0xff]
        %v734 = vld [vmem:[%s4 + $0xc8] sm:$0xff]
        %v735 = vld [vmem:[%s4 + $0xd0] sm:$0xff]
        %v736 = vld [vmem:[%s4 + $0xd8] sm:$0xff]
        %v737 = vld [vmem:[%s4 + $0xe0] sm:$0xff]
        %v738 = vld [vmem:[%s4 + $0xe8] sm:$0xff]
        %v739 = vld [vmem:[%s4 + $0xf0] sm:$0xff]
        %v740 = vld [vmem:[%s4 + $0xf8] sm:$0xff]
        %v741 = vld [vmem:[#allocation3] sm:$0xff]
        %v742 = vld [vmem:[#allocation4] sm:$0xff]
        %v743 = vld [vmem:[#allocation2] sm:$0xff]
        %v744 = vld [vmem:[#allocation2 + $0x8] sm:$0xff]
        %v745 = vld [vmem:[#allocation2 + $0x10] sm:$0xff]
        %v746 = vld [vmem:[#allocation2 + $0x18] sm:$0xff]
        %v747 = vpack.c.bf16 %v741, %v741
        %v780 = vunpack.c.l.b16 %v709
        %v781 = vunpack.c.h.b16 %v709
        %v782 = vunpack.c.l.b16 %v710
        %v783 = vunpack.c.h.b16 %v710
        %v784 = vunpack.c.l.b16 %v711
        %v785 = vunpack.c.h.b16 %v711
        %v786 = vunpack.c.l.b16 %v712
        %v787 = vunpack.c.h.b16 %v712
        %v788 = vunpack.c.l.b16 %v713
        %v789 = vunpack.c.h.b16 %v713
        %v790 = vunpack.c.l.b16 %v714
        %v791 = vunpack.c.h.b16 %v714
        %v792 = vunpack.c.l.b16 %v715
        %v793 = vunpack.c.h.b16 %v715
        %v794 = vunpack.c.l.b16 %v716
        %v795 = vunpack.c.h.b16 %v716
        %v796 = vunpack.c.l.b16 %v717
        %v797 = vunpack.c.h.b16 %v717
        %v798 = vunpack.c.l.b16 %v718
        %v799 = vunpack.c.h.b16 %v718
        %v800 = vunpack.c.l.b16 %v719
        %v801 = vunpack.c.h.b16 %v719
        %v802 = vunpack.c.l.b16 %v720
        %v803 = vunpack.c.h.b16 %v720
        %v804 = vunpack.c.l.b16 %v721
        %v805 = vunpack.c.h.b16 %v721
        %v806 = vunpack.c.l.b16 %v722
        %v807 = vunpack.c.h.b16 %v722
        %v808 = vunpack.c.l.b16 %v723
        %v809 = vunpack.c.h.b16 %v723
        %v810 = vunpack.c.l.b16 %v724
        %v811 = vunpack.c.h.b16 %v724
        %v812 = vunpack.c.l.b16 %v725
        %v813 = vunpack.c.h.b16 %v725
        %v814 = vunpack.c.l.b16 %v726
        %v815 = vunpack.c.h.b16 %v726
        %v816 = vunpack.c.l.b16 %v727
        %v817 = vunpack.c.h.b16 %v727
        %v818 = vunpack.c.l.b16 %v728
        %v819 = vunpack.c.h.b16 %v728
        %v820 = vunpack.c.l.b16 %v729
        %v821 = vunpack.c.h.b16 %v729
        %v822 = vunpack.c.l.b16 %v730
        %v823 = vunpack.c.h.b16 %v730
        %v824 = vunpack.c.l.b16 %v731
        %v825 = vunpack.c.h.b16 %v731
        %v826 = vunpack.c.l.b16 %v732
        %v827 = vunpack.c.h.b16 %v732
        %v828 = vunpack.c.l.b16 %v733
        %v829 = vunpack.c.h.b16 %v733
        %v830 = vunpack.c.l.b16 %v734
        %v831 = vunpack.c.h.b16 %v734
        %v832 = vunpack.c.l.b16 %v735
        %v833 = vunpack.c.h.b16 %v735
        %v834 = vunpack.c.l.b16 %v736
        %v835 = vunpack.c.h.b16 %v736
        %v836 = vunpack.c.l.b16 %v737
        %v837 = vunpack.c.h.b16 %v737
        %v838 = vunpack.c.l.b16 %v738
        %v839 = vunpack.c.h.b16 %v738
        %v840 = vunpack.c.l.b16 %v739
        %v841 = vunpack.c.h.b16 %v739
        %v842 = vunpack.c.l.b16 %v740
        %v843 = vunpack.c.h.b16 %v740
        %v844 = vpack.c.b16 %v784, %v780
        %v845 = vpack.c.b16 %v785, %v781
        %v846 = vpack.c.b16 %v786, %v782
        %v847 = vpack.c.b16 %v787, %v783
        %v848 = vpack.c.b16 %v792, %v788
        %v849 = vpack.c.b16 %v793, %v789
        %v850 = vpack.c.b16 %v794, %v790
        %v851 = vpack.c.b16 %v795, %v791
        %v852 = vpack.c.b16 %v800, %v796
        %v853 = vpack.c.b16 %v801, %v797
        %v854 = vpack.c.b16 %v802, %v798
        %v855 = vpack.c.b16 %v803, %v799
        %v856 = vpack.c.b16 %v808, %v804
        %v857 = vpack.c.b16 %v809, %v805
        %v858 = vpack.c.b16 %v810, %v806
        %v859 = vpack.c.b16 %v811, %v807
        %v860 = vpack.c.b16 %v816, %v812
        %v861 = vpack.c.b16 %v817, %v813
        %v862 = vpack.c.b16 %v818, %v814
        %v863 = vpack.c.b16 %v819, %v815
        %v864 = vpack.c.b16 %v824, %v820
        %v865 = vpack.c.b16 %v825, %v821
        %v866 = vpack.c.b16 %v826, %v822
        %v867 = vpack.c.b16 %v827, %v823
        %v868 = vpack.c.b16 %v832, %v828
        %v869 = vpack.c.b16 %v833, %v829
        %v870 = vpack.c.b16 %v834, %v830
        %v871 = vpack.c.b16 %v835, %v831
        %v872 = vpack.c.b16 %v840, %v836
        %v873 = vpack.c.b16 %v841, %v837
        %v874 = vpack.c.b16 %v842, %v838
        %v875 = vpack.c.b16 %v843, %v839
        %908 = vmatprep.subr.bf16.mxu0 %v873
        %909 = vmatpush1.bf16.msra.mxu0 %v872
        %910 = vmatprep.subr.bf16.mxu0 %v869
        %911 = vmatpush1.bf16.msra.mxu0 %v868
        %912 = vmatprep.subr.bf16.mxu0 %v865
        %913 = vmatpush1.bf16.msra.mxu0 %v864
        %914 = vmatprep.subr.bf16.mxu0 %v861
        %915 = vmatpush1.bf16.msra.mxu0 %v860
        %916 = vmatprep.subr.bf16.mxu0 %v857
        %917 = vmatpush1.bf16.msra.mxu0 %v856
        %918 = vmatprep.subr.bf16.mxu0 %v853
        %919 = vmatpush1.bf16.msra.mxu0 %v852
        %920 = vmatprep.subr.bf16.mxu0 %v849
        %921 = vmatpush1.bf16.msra.mxu0 %v848
        %922 = vmatprep.subr.bf16.mxu0 %v845
        %923 = vmatpush1.bf16.msra.mxu0 %v844
        %924 = vmatprep.subr.bf16.mxu0 0
        %925 = vmatpush2.bf16.msra.mxu0 0
        %926 = vmatprep.subr.bf16.mxu0 0
        %927 = vmatpush2.bf16.msra.mxu0 0
        %928 = vmatprep.subr.bf16.mxu0 0
        %929 = vmatpush2.bf16.msra.mxu0 0
        %930 = vmatprep.subr.bf16.mxu0 0
        %931 = vmatpush2.bf16.msra.mxu0 0
        %932 = vmatprep.subr.bf16.mxu0 0
        %933 = vmatpush2.bf16.msra.mxu0 0
        %934 = vmatprep.subr.bf16.mxu0 0
        %935 = vmatpush2.bf16.msra.mxu0 0
        %936 = vmatprep.subr.bf16.mxu0 0
        %937 = vmatpush2.bf16.msra.mxu0 0
        %938 = vmatprep.subr.bf16.mxu0 0
        %939 = vmatpush2.bf16.msra.mxu0 0
        %940 = vmatprep.mubr.bf16.mxu0 0
        %941 = vmatmul.mubr.bf16.gmra.mxu0 %v747
        %v942 = vpop.f32.mrf.mxu0
        %v943 = vadd.f32 0.0, %v942
        %v944 = vpop.f32.mrf.mxu0
        %v945 = vadd.f32 0.0, %v944
        %v946 = vpop.f32.mrf.mxu0
        %v947 = vpop.f32.mrf.mxu0
        %948 = vdwg.mxu0
        %949 = vmatprep.subr.bf16.mxu0 %v875
        %950 = vmatpush1.bf16.msra.mxu0 %v874
        %951 = vmatprep.subr.bf16.mxu0 %v871
        %952 = vmatpush1.bf16.msra.mxu0 %v870
        %953 = vmatprep.subr.bf16.mxu0 %v867
        %954 = vmatpush1.bf16.msra.mxu0 %v866
        %955 = vmatprep.subr.bf16.mxu0 %v863
        %956 = vmatpush1.bf16.msra.mxu0 %v862
        %957 = vmatprep.subr.bf16.mxu0 %v859
        %958 = vmatpush1.bf16.msra.mxu0 %v858
        %959 = vmatprep.subr.bf16.mxu0 %v855
        %960 = vmatpush1.bf16.msra.mxu0 %v854
        %961 = vmatprep.subr.bf16.mxu0 %v851
        %962 = vmatpush1.bf16.msra.mxu0 %v850
        %963 = vmatprep.subr.bf16.mxu0 %v847
        %964 = vmatpush1.bf16.msra.mxu0 %v846
        %965 = vmatprep.subr.bf16.mxu0 0
        %966 = vmatpush2.bf16.msra.mxu0 0
        %967 = vmatprep.subr.bf16.mxu0 0
        %968 = vmatpush2.bf16.msra.mxu0 0
        %969 = vmatprep.subr.bf16.mxu0 0
        %970 = vmatpush2.bf16.msra.mxu0 0
        %971 = vmatprep.subr.bf16.mxu0 0
        %972 = vmatpush2.bf16.msra.mxu0 0
        %973 = vmatprep.subr.bf16.mxu0 0
        %974 = vmatpush2.bf16.msra.mxu0 0
        %975 = vmatprep.subr.bf16.mxu0 0
        %976 = vmatpush2.bf16.msra.mxu0 0
        %977 = vmatprep.subr.bf16.mxu0 0
        %978 = vmatpush2.bf16.msra.mxu0 0
        %979 = vmatprep.subr.bf16.mxu0 0
        %980 = vmatpush2.bf16.msra.mxu0 0
        %981 = vmatprep.mubr.bf16.mxu0 0
        %982 = vmatmul.mubr.bf16.gmra.mxu0 %v747
        %v983 = vpop.f32.mrf.mxu0
        %v984 = vadd.f32 0.0, %v983
        %v985 = vpop.f32.mrf.mxu0
        %v986 = vadd.f32 0.0, %v985
        %v987 = vpop.f32.mrf.mxu0
        %v988 = vpop.f32.mrf.mxu0
        %989 = vdwg.mxu0
        %v990 = vadd.f32 %v743, %v943
        %v991 = vadd.f32 %v744, %v945
        %v992 = vadd.f32 %v745, %v984
        %v993 = vadd.f32 %v746, %v986
        %v994 = vmul.f32 %v990, 0.5
        %v995 = vtanh.pop %v994
        %v996 = vadd.f32 %v995, 1.0
        %v997 = vmul.f32 %v996, 0.5
        %v998 = vmul.f32 %v991, 0.5
        %v999 = vtanh.pop %v998
        %v1000 = vadd.f32 %v999, 1.0
        %v1001 = vmul.f32 %v1000, 0.5
        %v1002 = vtanh.pop %v992
        %v1003 = vmul.f32 %v993, 0.5
        %v1004 = vtanh.pop %v1003
        %v1005 = vadd.f32 %v1004, 1.0
        %v1006 = vmul.f32 %v1005, 0.5
        %v1007 = vmul.f32 %v1001, %v742
        %v1008 = vmul.f32 %v997, %v1002
        %v1009 = vadd.f32 %v1007, %v1008
        %v1010 = vtanh.pop %v1009
        %v1011 = vmul.f32 %v1006, %v1010
        %v1012 = vstv %s269
        %vm1013 = vcmp.lt.s32.totalorder %v1012, %v708
        %v1014 = vsel %vm1013, %v1011, %v741
        %v1015 = vsel %vm1013, %v1009, %v742
        %v1016 = vld [vmem:[#allocation2 + $0x20] sm:$0xff]
        %v1017 = vld [vmem:[#allocation2 + $0x28] sm:$0xff]
        %v1018 = vld [vmem:[#allocation2 + $0x30] sm:$0xff]
        %v1019 = vld [vmem:[#allocation2 + $0x38] sm:$0xff]
        %v1020 = vpack.c.bf16 %v1014, %v1014
        %1021 = vmatprep.subr.bf16.mxu0 %v873
        %1022 = vmatpush1.bf16.msra.mxu0 %v872
        %1023 = vmatprep.subr.bf16.mxu0 %v869
        %1024 = vmatpush1.bf16.msra.mxu0 %v868
        %1025 = vmatprep.subr.bf16.mxu0 %v865
        %1026 = vmatpush1.bf16.msra.mxu0 %v864
        %1027 = vmatprep.subr.bf16.mxu0 %v861
        %1028 = vmatpush1.bf16.msra.mxu0 %v860
        %1029 = vmatprep.subr.bf16.mxu0 %v857
        %1030 = vmatpush1.bf16.msra.mxu0 %v856
        %1031 = vmatprep.subr.bf16.mxu0 %v853
        %1032 = vmatpush1.bf16.msra.mxu0 %v852
        %1033 = vmatprep.subr.bf16.mxu0 %v849
        %1034 = vmatpush1.bf16.msra.mxu0 %v848
        %1035 = vmatprep.subr.bf16.mxu0 %v845
        %1036 = vmatpush1.bf16.msra.mxu0 %v844
        %1037 = vmatprep.subr.bf16.mxu0 0
        %1038 = vmatpush2.bf16.msra.mxu0 0
        %1039 = vmatprep.subr.bf16.mxu0 0
        %1040 = vmatpush2.bf16.msra.mxu0 0
        %1041 = vmatprep.subr.bf16.mxu0 0
        %1042 = vmatpush2.bf16.msra.mxu0 0
        %1043 = vmatprep.subr.bf16.mxu0 0
        %1044 = vmatpush2.bf16.msra.mxu0 0
        %1045 = vmatprep.subr.bf16.mxu0 0
        %1046 = vmatpush2.bf16.msra.mxu0 0
        %1047 = vmatprep.subr.bf16.mxu0 0
        %1048 = vmatpush2.bf16.msra.mxu0 0
        %1049 = vmatprep.subr.bf16.mxu0 0
        %1050 = vmatpush2.bf16.msra.mxu0 0
        %1051 = vmatprep.subr.bf16.mxu0 0
        %1052 = vmatpush2.bf16.msra.mxu0 0
        %1053 = vmatprep.mubr.bf16.mxu0 0
        %1054 = vmatmul.mubr.bf16.gmra.mxu0 %v1020
        %v1055 = vpop.f32.mrf.mxu0
        %v1056 = vadd.f32 0.0, %v1055
        %v1057 = vpop.f32.mrf.mxu0
        %v1058 = vadd.f32 0.0, %v1057
        %v1059 = vpop.f32.mrf.mxu0
        %v1060 = vpop.f32.mrf.mxu0
        %1061 = vdwg.mxu0
        %1062 = vmatprep.subr.bf16.mxu0 %v875
        %1063 = vmatpush1.bf16.msra.mxu0 %v874
        %1064 = vmatprep.subr.bf16.mxu0 %v871
        %1065 = vmatpush1.bf16.msra.mxu0 %v870
        %1066 = vmatprep.subr.bf16.mxu0 %v867
        %1067 = vmatpush1.bf16.msra.mxu0 %v866
        %1068 = vmatprep.subr.bf16.mxu0 %v863
        %1069 = vmatpush1.bf16.msra.mxu0 %v862
        %1070 = vmatprep.subr.bf16.mxu0 %v859
        %1071 = vmatpush1.bf16.msra.mxu0 %v858
        %1072 = vmatprep.subr.bf16.mxu0 %v855
        %1073 = vmatpush1.bf16.msra.mxu0 %v854
        %1074 = vmatprep.subr.bf16.mxu0 %v851
        %1075 = vmatpush1.bf16.msra.mxu0 %v850
        %1076 = vmatprep.subr.bf16.mxu0 %v847
        %1077 = vmatpush1.bf16.msra.mxu0 %v846
        %1078 = vmatprep.subr.bf16.mxu0 0
        %1079 = vmatpush2.bf16.msra.mxu0 0
        %1080 = vmatprep.subr.bf16.mxu0 0
        %1081 = vmatpush2.bf16.msra.mxu0 0
        %1082 = vmatprep.subr.bf16.mxu0 0
        %1083 = vmatpush2.bf16.msra.mxu0 0
        %1084 = vmatprep.subr.bf16.mxu0 0
        %1085 = vmatpush2.bf16.msra.mxu0 0
        %1086 = vmatprep.subr.bf16.mxu0 0
        %1087 = vmatpush2.bf16.msra.mxu0 0
        %1088 = vmatprep.subr.bf16.mxu0 0
        %1089 = vmatpush2.bf16.msra.mxu0 0
        %1090 = vmatprep.subr.bf16.mxu0 0
        %1091 = vmatpush2.bf16.msra.mxu0 0
        %1092 = vmatprep.subr.bf16.mxu0 0
        %1093 = vmatpush2.bf16.msra.mxu0 0
        %1094 = vmatprep.mubr.bf16.mxu0 0
        %1095 = vmatmul.mubr.bf16.gmra.mxu0 %v1020
        %v1096 = vpop.f32.mrf.mxu0
        %v1097 = vadd.f32 0.0, %v1096
        %v1098 = vpop.f32.mrf.mxu0
        %v1099 = vadd.f32 0.0, %v1098
        %v1100 = vpop.f32.mrf.mxu0
        %v1101 = vpop.f32.mrf.mxu0
        %1102 = vdwg.mxu0
        %v1103 = vadd.f32 %v1016, %v1056
        %v1104 = vadd.f32 %v1017, %v1058
        %v1105 = vadd.f32 %v1018, %v1097
        %v1106 = vadd.f32 %v1019, %v1099
        %v1107 = vmul.f32 %v1103, 0.5
        %v1108 = vtanh.pop %v1107
        %v1109 = vadd.f32 %v1108, 1.0
        %v1110 = vmul.f32 %v1109, 0.5
        %v1111 = vmul.f32 %v1104, 0.5
        %v1112 = vtanh.pop %v1111
        %v1113 = vadd.f32 %v1112, 1.0
        %v1114 = vmul.f32 %v1113, 0.5
        %v1115 = vtanh.pop %v1105
        %v1116 = vmul.f32 %v1106, 0.5
        %v1117 = vtanh.pop %v1116
        %v1118 = vadd.f32 %v1117, 1.0
        %v1119 = vmul.f32 %v1118, 0.5
        %v1120 = vmul.f32 %v1114, %v1015
        %v1121 = vmul.f32 %v1110, %v1115
        %v1122 = vadd.f32 %v1120, %v1121
        %v1123 = vtanh.pop %v1122
        %v1124 = vmul.f32 %v1119, %v1123
        %s1125 = sadd.s32 %s269, 1
        %v1126 = vstv %s1125
        %vm1127 = vcmp.lt.s32.totalorder %v1126, %v708
        %v1128 = vsel %vm1127, %v1124, %v1014
        %v1129 = vsel %vm1127, %v1122, %v1015
        %v1130 = vld [vmem:[#allocation2 + $0x40] sm:$0xff]
        %v1131 = vld [vmem:[#allocation2 + $0x48] sm:$0xff]
        %v1132 = vld [vmem:[#allocation2 + $0x50] sm:$0xff]
        %v1133 = vld [vmem:[#allocation2 + $0x58] sm:$0xff]
        %v1134 = vpack.c.bf16 %v1128, %v1128
        %1135 = vmatprep.subr.bf16.mxu0 %v873
        %1136 = vmatpush1.bf16.msra.mxu0 %v872
        %1137 = vmatprep.subr.bf16.mxu0 %v869
        %1138 = vmatpush1.bf16.msra.mxu0 %v868
        %1139 = vmatprep.subr.bf16.mxu0 %v865
        %1140 = vmatpush1.bf16.msra.mxu0 %v864
        %1141 = vmatprep.subr.bf16.mxu0 %v861
        %1142 = vmatpush1.bf16.msra.mxu0 %v860
        %1143 = vmatprep.subr.bf16.mxu0 %v857
        %1144 = vmatpush1.bf16.msra.mxu0 %v856
        %1145 = vmatprep.subr.bf16.mxu0 %v853
        %1146 = vmatpush1.bf16.msra.mxu0 %v852
        %1147 = vmatprep.subr.bf16.mxu0 %v849
        %1148 = vmatpush1.bf16.msra.mxu0 %v848
        %1149 = vmatprep.subr.bf16.mxu0 %v845
        %1150 = vmatpush1.bf16.msra.mxu0 %v844
        %1151 = vmatprep.subr.bf16.mxu0 0
        %1152 = vmatpush2.bf16.msra.mxu0 0
        %1153 = vmatprep.subr.bf16.mxu0 0
        %1154 = vmatpush2.bf16.msra.mxu0 0
        %1155 = vmatprep.subr.bf16.mxu0 0
        %1156 = vmatpush2.bf16.msra.mxu0 0
        %1157 = vmatprep.subr.bf16.mxu0 0
        %1158 = vmatpush2.bf16.msra.mxu0 0
        %1159 = vmatprep.subr.bf16.mxu0 0
        %1160 = vmatpush2.bf16.msra.mxu0 0
        %1161 = vmatprep.subr.bf16.mxu0 0
        %1162 = vmatpush2.bf16.msra.mxu0 0
        %1163 = vmatprep.subr.bf16.mxu0 0
        %1164 = vmatpush2.bf16.msra.mxu0 0
        %1165 = vmatprep.subr.bf16.mxu0 0
        %1166 = vmatpush2.bf16.msra.mxu0 0
        %1167 = vmatprep.mubr.bf16.mxu0 0
        %1168 = vmatmul.mubr.bf16.gmra.mxu0 %v1134
        %v1169 = vpop.f32.mrf.mxu0
        %v1170 = vadd.f32 0.0, %v1169
        %v1171 = vpop.f32.mrf.mxu0
        %v1172 = vadd.f32 0.0, %v1171
        %v1173 = vpop.f32.mrf.mxu0
        %v1174 = vpop.f32.mrf.mxu0
        %1175 = vdwg.mxu0
        %1176 = vmatprep.subr.bf16.mxu0 %v875
        %1177 = vmatpush1.bf16.msra.mxu0 %v874
        %1178 = vmatprep.subr.bf16.mxu0 %v871
        %1179 = vmatpush1.bf16.msra.mxu0 %v870
        %1180 = vmatprep.subr.bf16.mxu0 %v867
        %1181 = vmatpush1.bf16.msra.mxu0 %v866
        %1182 = vmatprep.subr.bf16.mxu0 %v863
        %1183 = vmatpush1.bf16.msra.mxu0 %v862
        %1184 = vmatprep.subr.bf16.mxu0 %v859
        %1185 = vmatpush1.bf16.msra.mxu0 %v858
        %1186 = vmatprep.subr.bf16.mxu0 %v855
        %1187 = vmatpush1.bf16.msra.mxu0 %v854
        %1188 = vmatprep.subr.bf16.mxu0 %v851
        %1189 = vmatpush1.bf16.msra.mxu0 %v850
        %1190 = vmatprep.subr.bf16.mxu0 %v847
        %1191 = vmatpush1.bf16.msra.mxu0 %v846
        %1192 = vmatprep.subr.bf16.mxu0 0
        %1193 = vmatpush2.bf16.msra.mxu0 0
        %1194 = vmatprep.subr.bf16.mxu0 0
        %1195 = vmatpush2.bf16.msra.mxu0 0
        %1196 = vmatprep.subr.bf16.mxu0 0
        %1197 = vmatpush2.bf16.msra.mxu0 0
        %1198 = vmatprep.subr.bf16.mxu0 0
        %1199 = vmatpush2.bf16.msra.mxu0 0
        %1200 = vmatprep.subr.bf16.mxu0 0
        %1201 = vmatpush2.bf16.msra.mxu0 0
        %1202 = vmatprep.subr.bf16.mxu0 0
        %1203 = vmatpush2.bf16.msra.mxu0 0
        %1204 = vmatprep.subr.bf16.mxu0 0
        %1205 = vmatpush2.bf16.msra.mxu0 0
        %1206 = vmatprep.subr.bf16.mxu0 0
        %1207 = vmatpush2.bf16.msra.mxu0 0
        %1208 = vmatprep.mubr.bf16.mxu0 0
        %1209 = vmatmul.mubr.bf16.gmra.mxu0 %v1134
        %v1210 = vpop.f32.mrf.mxu0
        %v1211 = vadd.f32 0.0, %v1210
        %v1212 = vpop.f32.mrf.mxu0
        %v1213 = vadd.f32 0.0, %v1212
        %v1214 = vpop.f32.mrf.mxu0
        %v1215 = vpop.f32.mrf.mxu0
        %1216 = vdwg.mxu0
        %v1217 = vadd.f32 %v1130, %v1170
        %v1218 = vadd.f32 %v1131, %v1172
        %v1219 = vadd.f32 %v1132, %v1211
        %v1220 = vadd.f32 %v1133, %v1213
        %v1221 = vmul.f32 %v1217, 0.5
        %v1222 = vtanh.pop %v1221
        %v1223 = vadd.f32 %v1222, 1.0
        %v1224 = vmul.f32 %v1223, 0.5
        %v1225 = vmul.f32 %v1218, 0.5
        %v1226 = vtanh.pop %v1225
        %v1227 = vadd.f32 %v1226, 1.0
        %v1228 = vmul.f32 %v1227, 0.5
        %v1229 = vtanh.pop %v1219
        %v1230 = vmul.f32 %v1220, 0.5
        %v1231 = vtanh.pop %v1230
        %v1232 = vadd.f32 %v1231, 1.0
        %v1233 = vmul.f32 %v1232, 0.5
        %v1234 = vmul.f32 %v1228, %v1129
        %v1235 = vmul.f32 %v1224, %v1229
        %v1236 = vadd.f32 %v1234, %v1235
        %v1237 = vtanh.pop %v1236
        %v1238 = vmul.f32 %v1233, %v1237
        %s1239 = sadd.s32 %s269, 2
        %v1240 = vstv %s1239
        %vm1241 = vcmp.lt.s32.totalorder %v1240, %v708
        %v1242 = vsel %vm1241, %v1238, %v1128
        %v1243 = vsel %vm1241, %v1236, %v1129
        %v1244 = vld [vmem:[#allocation2 + $0x60] sm:$0xff]
        %v1245 = vld [vmem:[#allocation2 + $0x68] sm:$0xff]
        %v1246 = vld [vmem:[#allocation2 + $0x70] sm:$0xff]
        %v1247 = vld [vmem:[#allocation2 + $0x78] sm:$0xff]
        %v1248 = vpack.c.bf16 %v1242, %v1242
        %1249 = vmatprep.subr.bf16.mxu0 %v873
        %1250 = vmatpush1.bf16.msra.mxu0 %v872
        %1251 = vmatprep.subr.bf16.mxu0 %v869
        %1252 = vmatpush1.bf16.msra.mxu0 %v868
        %1253 = vmatprep.subr.bf16.mxu0 %v865
        %1254 = vmatpush1.bf16.msra.mxu0 %v864
        %1255 = vmatprep.subr.bf16.mxu0 %v861
        %1256 = vmatpush1.bf16.msra.mxu0 %v860
        %1257 = vmatprep.subr.bf16.mxu0 %v857
        %1258 = vmatpush1.bf16.msra.mxu0 %v856
        %1259 = vmatprep.subr.bf16.mxu0 %v853
        %1260 = vmatpush1.bf16.msra.mxu0 %v852
        %1261 = vmatprep.subr.bf16.mxu0 %v849
        %1262 = vmatpush1.bf16.msra.mxu0 %v848
        %1263 = vmatprep.subr.bf16.mxu0 %v845
        %1264 = vmatpush1.bf16.msra.mxu0 %v844
        %1265 = vmatprep.subr.bf16.mxu0 0
        %1266 = vmatpush2.bf16.msra.mxu0 0
        %1267 = vmatprep.subr.bf16.mxu0 0
        %1268 = vmatpush2.bf16.msra.mxu0 0
        %1269 = vmatprep.subr.bf16.mxu0 0
        %1270 = vmatpush2.bf16.msra.mxu0 0
        %1271 = vmatprep.subr.bf16.mxu0 0
        %1272 = vmatpush2.bf16.msra.mxu0 0
        %1273 = vmatprep.subr.bf16.mxu0 0
        %1274 = vmatpush2.bf16.msra.mxu0 0
        %1275 = vmatprep.subr.bf16.mxu0 0
        %1276 = vmatpush2.bf16.msra.mxu0 0
        %1277 = vmatprep.subr.bf16.mxu0 0
        %1278 = vmatpush2.bf16.msra.mxu0 0
        %1279 = vmatprep.subr.bf16.mxu0 0
        %1280 = vmatpush2.bf16.msra.mxu0 0
        %1281 = vmatprep.mubr.bf16.mxu0 0
        %1282 = vmatmul.mubr.bf16.gmra.mxu0 %v1248
        %v1283 = vpop.f32.mrf.mxu0
        %v1284 = vadd.f32 0.0, %v1283
        %v1285 = vpop.f32.mrf.mxu0
        %v1286 = vadd.f32 0.0, %v1285
        %v1287 = vpop.f32.mrf.mxu0
        %v1288 = vpop.f32.mrf.mxu0
        %1289 = vdwg.mxu0
        %1290 = vmatprep.subr.bf16.mxu0 %v875
        %1291 = vmatpush1.bf16.msra.mxu0 %v874
        %1292 = vmatprep.subr.bf16.mxu0 %v871
        %1293 = vmatpush1.bf16.msra.mxu0 %v870
        %1294 = vmatprep.subr.bf16.mxu0 %v867
        %1295 = vmatpush1.bf16.msra.mxu0 %v866
        %1296 = vmatprep.subr.bf16.mxu0 %v863
        %1297 = vmatpush1.bf16.msra.mxu0 %v862
        %1298 = vmatprep.subr.bf16.mxu0 %v859
        %1299 = vmatpush1.bf16.msra.mxu0 %v858
        %1300 = vmatprep.subr.bf16.mxu0 %v855
        %1301 = vmatpush1.bf16.msra.mxu0 %v854
        %1302 = vmatprep.subr.bf16.mxu0 %v851
        %1303 = vmatpush1.bf16.msra.mxu0 %v850
        %1304 = vmatprep.subr.bf16.mxu0 %v847
        %1305 = vmatpush1.bf16.msra.mxu0 %v846
        %1306 = vmatprep.subr.bf16.mxu0 0
        %1307 = vmatpush2.bf16.msra.mxu0 0
        %1308 = vmatprep.subr.bf16.mxu0 0
        %1309 = vmatpush2.bf16.msra.mxu0 0
        %1310 = vmatprep.subr.bf16.mxu0 0
        %1311 = vmatpush2.bf16.msra.mxu0 0
        %1312 = vmatprep.subr.bf16.mxu0 0
        %1313 = vmatpush2.bf16.msra.mxu0 0
        %1314 = vmatprep.subr.bf16.mxu0 0
        %1315 = vmatpush2.bf16.msra.mxu0 0
        %1316 = vmatprep.subr.bf16.mxu0 0
        %1317 = vmatpush2.bf16.msra.mxu0 0
        %1318 = vmatprep.subr.bf16.mxu0 0
        %1319 = vmatpush2.bf16.msra.mxu0 0
        %1320 = vmatprep.subr.bf16.mxu0 0
        %1321 = vmatpush2.bf16.msra.mxu0 0
        %1322 = vmatprep.mubr.bf16.mxu0 0
        %1323 = vmatmul.mubr.bf16.gmra.mxu0 %v1248
        %v1324 = vpop.f32.mrf.mxu0
        %v1325 = vadd.f32 0.0, %v1324
        %v1326 = vpop.f32.mrf.mxu0
        %v1327 = vadd.f32 0.0, %v1326
        %v1328 = vpop.f32.mrf.mxu0
        %v1329 = vpop.f32.mrf.mxu0
        %1330 = vdwg.mxu0
        %v1331 = vadd.f32 %v1244, %v1284
        %v1332 = vadd.f32 %v1245, %v1286
        %v1333 = vadd.f32 %v1246, %v1325
        %v1334 = vadd.f32 %v1247, %v1327
        %v1335 = vmul.f32 %v1331, 0.5
        %v1336 = vtanh.pop %v1335
        %v1337 = vadd.f32 %v1336, 1.0
        %v1338 = vmul.f32 %v1337, 0.5
        %v1339 = vmul.f32 %v1332, 0.5
        %v1340 = vtanh.pop %v1339
        %v1341 = vadd.f32 %v1340, 1.0
        %v1342 = vmul.f32 %v1341, 0.5
        %v1343 = vtanh.pop %v1333
        %v1344 = vmul.f32 %v1334, 0.5
        %v1345 = vtanh.pop %v1344
        %v1346 = vadd.f32 %v1345, 1.0
        %v1347 = vmul.f32 %v1346, 0.5
        %v1348 = vmul.f32 %v1342, %v1243
        %v1349 = vmul.f32 %v1338, %v1343
        %v1350 = vadd.f32 %v1348, %v1349
        %v1351 = vtanh.pop %v1350
        %v1352 = vmul.f32 %v1347, %v1351
        %s1353 = sadd.s32 %s269, 3
        %v1354 = vstv %s1353
        %vm1355 = vcmp.lt.s32.totalorder %v1354, %v708
        %v1356 = vsel %vm1355, %v1352, %v1242
        %v1357 = vsel %vm1355, %v1350, %v1243
        %v1358 = vld [vmem:[#allocation2 + $0x80] sm:$0xff]
        %v1359 = vld [vmem:[#allocation2 + $0x88] sm:$0xff]
        %v1360 = vld [vmem:[#allocation2 + $0x90] sm:$0xff]
        %v1361 = vld [vmem:[#allocation2 + $0x98] sm:$0xff]
        %v1362 = vpack.c.bf16 %v1356, %v1356
        %1363 = vmatprep.subr.bf16.mxu0 %v873
        %1364 = vmatpush1.bf16.msra.mxu0 %v872
        %1365 = vmatprep.subr.bf16.mxu0 %v869
        %1366 = vmatpush1.bf16.msra.mxu0 %v868
        %1367 = vmatprep.subr.bf16.mxu0 %v865
        %1368 = vmatpush1.bf16.msra.mxu0 %v864
        %1369 = vmatprep.subr.bf16.mxu0 %v861
        %1370 = vmatpush1.bf16.msra.mxu0 %v860
        %1371 = vmatprep.subr.bf16.mxu0 %v857
        %1372 = vmatpush1.bf16.msra.mxu0 %v856
        %1373 = vmatprep.subr.bf16.mxu0 %v853
        %1374 = vmatpush1.bf16.msra.mxu0 %v852
        %1375 = vmatprep.subr.bf16.mxu0 %v849
        %1376 = vmatpush1.bf16.msra.mxu0 %v848
        %1377 = vmatprep.subr.bf16.mxu0 %v845
        %1378 = vmatpush1.bf16.msra.mxu0 %v844
        %1379 = vmatprep.subr.bf16.mxu0 0
        %1380 = vmatpush2.bf16.msra.mxu0 0
        %1381 = vmatprep.subr.bf16.mxu0 0
        %1382 = vmatpush2.bf16.msra.mxu0 0
        %1383 = vmatprep.subr.bf16.mxu0 0
        %1384 = vmatpush2.bf16.msra.mxu0 0
        %1385 = vmatprep.subr.bf16.mxu0 0
        %1386 = vmatpush2.bf16.msra.mxu0 0
        %1387 = vmatprep.subr.bf16.mxu0 0
        %1388 = vmatpush2.bf16.msra.mxu0 0
        %1389 = vmatprep.subr.bf16.mxu0 0
        %1390 = vmatpush2.bf16.msra.mxu0 0
        %1391 = vmatprep.subr.bf16.mxu0 0
        %1392 = vmatpush2.bf16.msra.mxu0 0
        %1393 = vmatprep.subr.bf16.mxu0 0
        %1394 = vmatpush2.bf16.msra.mxu0 0
        %1395 = vmatprep.mubr.bf16.mxu0 0
        %1396 = vmatmul.mubr.bf16.gmra.mxu0 %v1362
        %v1397 = vpop.f32.mrf.mxu0
        %v1398 = vadd.f32 0.0, %v1397
        %v1399 = vpop.f32.mrf.mxu0
        %v1400 = vadd.f32 0.0, %v1399
        %v1401 = vpop.f32.mrf.mxu0
        %v1402 = vpop.f32.mrf.mxu0
        %1403 = vdwg.mxu0
        %1404 = vmatprep.subr.bf16.mxu0 %v875
        %1405 = vmatpush1.bf16.msra.mxu0 %v874
        %1406 = vmatprep.subr.bf16.mxu0 %v871
        %1407 = vmatpush1.bf16.msra.mxu0 %v870
        %1408 = vmatprep.subr.bf16.mxu0 %v867
        %1409 = vmatpush1.bf16.msra.mxu0 %v866
        %1410 = vmatprep.subr.bf16.mxu0 %v863
        %1411 = vmatpush1.bf16.msra.mxu0 %v862
        %1412 = vmatprep.subr.bf16.mxu0 %v859
        %1413 = vmatpush1.bf16.msra.mxu0 %v858
        %1414 = vmatprep.subr.bf16.mxu0 %v855
        %1415 = vmatpush1.bf16.msra.mxu0 %v854
        %1416 = vmatprep.subr.bf16.mxu0 %v851
        %1417 = vmatpush1.bf16.msra.mxu0 %v850
        %1418 = vmatprep.subr.bf16.mxu0 %v847
        %1419 = vmatpush1.bf16.msra.mxu0 %v846
        %1420 = vmatprep.subr.bf16.mxu0 0
        %1421 = vmatpush2.bf16.msra.mxu0 0
        %1422 = vmatprep.subr.bf16.mxu0 0
        %1423 = vmatpush2.bf16.msra.mxu0 0
        %1424 = vmatprep.subr.bf16.mxu0 0
        %1425 = vmatpush2.bf16.msra.mxu0 0
        %1426 = vmatprep.subr.bf16.mxu0 0
        %1427 = vmatpush2.bf16.msra.mxu0 0
        %1428 = vmatprep.subr.bf16.mxu0 0
        %1429 = vmatpush2.bf16.msra.mxu0 0
        %1430 = vmatprep.subr.bf16.mxu0 0
        %1431 = vmatpush2.bf16.msra.mxu0 0
        %1432 = vmatprep.subr.bf16.mxu0 0
        %1433 = vmatpush2.bf16.msra.mxu0 0
        %1434 = vmatprep.subr.bf16.mxu0 0
        %1435 = vmatpush2.bf16.msra.mxu0 0
        %1436 = vmatprep.mubr.bf16.mxu0 0
        %1437 = vmatmul.mubr.bf16.gmra.mxu0 %v1362
        %v1438 = vpop.f32.mrf.mxu0
        %v1439 = vadd.f32 0.0, %v1438
        %v1440 = vpop.f32.mrf.mxu0
        %v1441 = vadd.f32 0.0, %v1440
        %v1442 = vpop.f32.mrf.mxu0
        %v1443 = vpop.f32.mrf.mxu0
        %1444 = vdwg.mxu0
        %v1445 = vadd.f32 %v1358, %v1398
        %v1446 = vadd.f32 %v1359, %v1400
        %v1447 = vadd.f32 %v1360, %v1439
        %v1448 = vadd.f32 %v1361, %v1441
        %v1449 = vmul.f32 %v1445, 0.5
        %v1450 = vtanh.pop %v1449
        %v1451 = vadd.f32 %v1450, 1.0
        %v1452 = vmul.f32 %v1451, 0.5
        %v1453 = vmul.f32 %v1446, 0.5
        %v1454 = vtanh.pop %v1453
        %v1455 = vadd.f32 %v1454, 1.0
        %v1456 = vmul.f32 %v1455, 0.5
        %v1457 = vtanh.pop %v1447
        %v1458 = vmul.f32 %v1448, 0.5
        %v1459 = vtanh.pop %v1458
        %v1460 = vadd.f32 %v1459, 1.0
        %v1461 = vmul.f32 %v1460, 0.5
        %v1462 = vmul.f32 %v1456, %v1357
        %v1463 = vmul.f32 %v1452, %v1457
        %v1464 = vadd.f32 %v1462, %v1463
        %v1465 = vtanh.pop %v1464
        %v1466 = vmul.f32 %v1461, %v1465
        %s1467 = sadd.s32 %s269, 4
        %v1468 = vstv %s1467
        %vm1469 = vcmp.lt.s32.totalorder %v1468, %v708
        %v1470 = vsel %vm1469, %v1466, %v1356
        %v1471 = vsel %vm1469, %v1464, %v1357
        %v1472 = vld [vmem:[#allocation2 + $0xa0] sm:$0xff]
        %v1473 = vld [vmem:[#allocation2 + $0xa8] sm:$0xff]
        %v1474 = vld [vmem:[#allocation2 + $0xb0] sm:$0xff]
        %v1475 = vld [vmem:[#allocation2 + $0xb8] sm:$0xff]
        %v1476 = vpack.c.bf16 %v1470, %v1470
        %1477 = vmatprep.subr.bf16.mxu0 %v873
        %1478 = vmatpush1.bf16.msra.mxu0 %v872
        %1479 = vmatprep.subr.bf16.mxu0 %v869
        %1480 = vmatpush1.bf16.msra.mxu0 %v868
        %1481 = vmatprep.subr.bf16.mxu0 %v865
        %1482 = vmatpush1.bf16.msra.mxu0 %v864
        %1483 = vmatprep.subr.bf16.mxu0 %v861
        %1484 = vmatpush1.bf16.msra.mxu0 %v860
        %1485 = vmatprep.subr.bf16.mxu0 %v857
        %1486 = vmatpush1.bf16.msra.mxu0 %v856
        %1487 = vmatprep.subr.bf16.mxu0 %v853
        %1488 = vmatpush1.bf16.msra.mxu0 %v852
        %1489 = vmatprep.subr.bf16.mxu0 %v849
        %1490 = vmatpush1.bf16.msra.mxu0 %v848
        %1491 = vmatprep.subr.bf16.mxu0 %v845
        %1492 = vmatpush1.bf16.msra.mxu0 %v844
        %1493 = vmatprep.subr.bf16.mxu0 0
        %1494 = vmatpush2.bf16.msra.mxu0 0
        %1495 = vmatprep.subr.bf16.mxu0 0
        %1496 = vmatpush2.bf16.msra.mxu0 0
        %1497 = vmatprep.subr.bf16.mxu0 0
        %1498 = vmatpush2.bf16.msra.mxu0 0
        %1499 = vmatprep.subr.bf16.mxu0 0
        %1500 = vmatpush2.bf16.msra.mxu0 0
        %1501 = vmatprep.subr.bf16.mxu0 0
        %1502 = vmatpush2.bf16.msra.mxu0 0
        %1503 = vmatprep.subr.bf16.mxu0 0
        %1504 = vmatpush2.bf16.msra.mxu0 0
        %1505 = vmatprep.subr.bf16.mxu0 0
        %1506 = vmatpush2.bf16.msra.mxu0 0
        %1507 = vmatprep.subr.bf16.mxu0 0
        %1508 = vmatpush2.bf16.msra.mxu0 0
        %1509 = vmatprep.mubr.bf16.mxu0 0
        %1510 = vmatmul.mubr.bf16.gmra.mxu0 %v1476
        %v1511 = vpop.f32.mrf.mxu0
        %v1512 = vadd.f32 0.0, %v1511
        %v1513 = vpop.f32.mrf.mxu0
        %v1514 = vadd.f32 0.0, %v1513
        %v1515 = vpop.f32.mrf.mxu0
        %v1516 = vpop.f32.mrf.mxu0
        %1517 = vdwg.mxu0
        %1518 = vmatprep.subr.bf16.mxu0 %v875
        %1519 = vmatpush1.bf16.msra.mxu0 %v874
        %1520 = vmatprep.subr.bf16.mxu0 %v871
        %1521 = vmatpush1.bf16.msra.mxu0 %v870
        %1522 = vmatprep.subr.bf16.mxu0 %v867
        %1523 = vmatpush1.bf16.msra.mxu0 %v866
        %1524 = vmatprep.subr.bf16.mxu0 %v863
        %1525 = vmatpush1.bf16.msra.mxu0 %v862
        %1526 = vmatprep.subr.bf16.mxu0 %v859
        %1527 = vmatpush1.bf16.msra.mxu0 %v858
        %1528 = vmatprep.subr.bf16.mxu0 %v855
        %1529 = vmatpush1.bf16.msra.mxu0 %v854
        %1530 = vmatprep.subr.bf16.mxu0 %v851
        %1531 = vmatpush1.bf16.msra.mxu0 %v850
        %1532 = vmatprep.subr.bf16.mxu0 %v847
        %1533 = vmatpush1.bf16.msra.mxu0 %v846
        %1534 = vmatprep.subr.bf16.mxu0 0
        %1535 = vmatpush2.bf16.msra.mxu0 0
        %1536 = vmatprep.subr.bf16.mxu0 0
        %1537 = vmatpush2.bf16.msra.mxu0 0
        %1538 = vmatprep.subr.bf16.mxu0 0
        %1539 = vmatpush2.bf16.msra.mxu0 0
        %1540 = vmatprep.subr.bf16.mxu0 0
        %1541 = vmatpush2.bf16.msra.mxu0 0
        %1542 = vmatprep.subr.bf16.mxu0 0
        %1543 = vmatpush2.bf16.msra.mxu0 0
        %1544 = vmatprep.subr.bf16.mxu0 0
        %1545 = vmatpush2.bf16.msra.mxu0 0
        %1546 = vmatprep.subr.bf16.mxu0 0
        %1547 = vmatpush2.bf16.msra.mxu0 0
        %1548 = vmatprep.subr.bf16.mxu0 0
        %1549 = vmatpush2.bf16.msra.mxu0 0
        %1550 = vmatprep.mubr.bf16.mxu0 0
        %1551 = vmatmul.mubr.bf16.gmra.mxu0 %v1476
        %v1552 = vpop.f32.mrf.mxu0
        %v1553 = vadd.f32 0.0, %v1552
        %v1554 = vpop.f32.mrf.mxu0
        %v1555 = vadd.f32 0.0, %v1554
        %v1556 = vpop.f32.mrf.mxu0
        %v1557 = vpop.f32.mrf.mxu0
        %1558 = vdwg.mxu0
        %v1559 = vadd.f32 %v1472, %v1512
        %v1560 = vadd.f32 %v1473, %v1514
        %v1561 = vadd.f32 %v1474, %v1553
        %v1562 = vadd.f32 %v1475, %v1555
        %v1563 = vmul.f32 %v1559, 0.5
        %v1564 = vtanh.pop %v1563
        %v1565 = vadd.f32 %v1564, 1.0
        %v1566 = vmul.f32 %v1565, 0.5
        %v1567 = vmul.f32 %v1560, 0.5
        %v1568 = vtanh.pop %v1567
        %v1569 = vadd.f32 %v1568, 1.0
        %v1570 = vmul.f32 %v1569, 0.5
        %v1571 = vtanh.pop %v1561
        %v1572 = vmul.f32 %v1562, 0.5
        %v1573 = vtanh.pop %v1572
        %v1574 = vadd.f32 %v1573, 1.0
        %v1575 = vmul.f32 %v1574, 0.5
        %v1576 = vmul.f32 %v1570, %v1471
        %v1577 = vmul.f32 %v1566, %v1571
        %v1578 = vadd.f32 %v1576, %v1577
        %v1579 = vtanh.pop %v1578
        %v1580 = vmul.f32 %v1575, %v1579
        %s1581 = sadd.s32 %s269, 5
        %v1582 = vstv %s1581
        %vm1583 = vcmp.lt.s32.totalorder %v1582, %v708
        %v1584 = vsel %vm1583, %v1580, %v1470
        %v1585 = vsel %vm1583, %v1578, %v1471
        %v1586 = vld [vmem:[#allocation2 + $0xc0] sm:$0xff]
        %v1587 = vld [vmem:[#allocation2 + $0xc8] sm:$0xff]
        %v1588 = vld [vmem:[#allocation2 + $0xd0] sm:$0xff]
        %v1589 = vld [vmem:[#allocation2 + $0xd8] sm:$0xff]
        %v1590 = vpack.c.bf16 %v1584, %v1584
        %1591 = vmatprep.subr.bf16.mxu0 %v873
        %1592 = vmatpush1.bf16.msra.mxu0 %v872
        %1593 = vmatprep.subr.bf16.mxu0 %v869
        %1594 = vmatpush1.bf16.msra.mxu0 %v868
        %1595 = vmatprep.subr.bf16.mxu0 %v865
        %1596 = vmatpush1.bf16.msra.mxu0 %v864
        %1597 = vmatprep.subr.bf16.mxu0 %v861
        %1598 = vmatpush1.bf16.msra.mxu0 %v860
        %1599 = vmatprep.subr.bf16.mxu0 %v857
        %1600 = vmatpush1.bf16.msra.mxu0 %v856
        %1601 = vmatprep.subr.bf16.mxu0 %v853
        %1602 = vmatpush1.bf16.msra.mxu0 %v852
        %1603 = vmatprep.subr.bf16.mxu0 %v849
        %1604 = vmatpush1.bf16.msra.mxu0 %v848
        %1605 = vmatprep.subr.bf16.mxu0 %v845
        %1606 = vmatpush1.bf16.msra.mxu0 %v844
        %1607 = vmatprep.subr.bf16.mxu0 0
        %1608 = vmatpush2.bf16.msra.mxu0 0
        %1609 = vmatprep.subr.bf16.mxu0 0
        %1610 = vmatpush2.bf16.msra.mxu0 0
        %1611 = vmatprep.subr.bf16.mxu0 0
        %1612 = vmatpush2.bf16.msra.mxu0 0
        %1613 = vmatprep.subr.bf16.mxu0 0
        %1614 = vmatpush2.bf16.msra.mxu0 0
        %1615 = vmatprep.subr.bf16.mxu0 0
        %1616 = vmatpush2.bf16.msra.mxu0 0
        %1617 = vmatprep.subr.bf16.mxu0 0
        %1618 = vmatpush2.bf16.msra.mxu0 0
        %1619 = vmatprep.subr.bf16.mxu0 0
        %1620 = vmatpush2.bf16.msra.mxu0 0
        %1621 = vmatprep.subr.bf16.mxu0 0
        %1622 = vmatpush2.bf16.msra.mxu0 0
        %1623 = vmatprep.mubr.bf16.mxu0 0
        %1624 = vmatmul.mubr.bf16.gmra.mxu0 %v1590
        %v1625 = vpop.f32.mrf.mxu0
        %v1626 = vadd.f32 0.0, %v1625
        %v1627 = vpop.f32.mrf.mxu0
        %v1628 = vadd.f32 0.0, %v1627
        %v1629 = vpop.f32.mrf.mxu0
        %v1630 = vpop.f32.mrf.mxu0
        %1631 = vdwg.mxu0
        %1632 = vmatprep.subr.bf16.mxu0 %v875
        %1633 = vmatpush1.bf16.msra.mxu0 %v874
        %1634 = vmatprep.subr.bf16.mxu0 %v871
        %1635 = vmatpush1.bf16.msra.mxu0 %v870
        %1636 = vmatprep.subr.bf16.mxu0 %v867
        %1637 = vmatpush1.bf16.msra.mxu0 %v866
        %1638 = vmatprep.subr.bf16.mxu0 %v863
        %1639 = vmatpush1.bf16.msra.mxu0 %v862
        %1640 = vmatprep.subr.bf16.mxu0 %v859
        %1641 = vmatpush1.bf16.msra.mxu0 %v858
        %1642 = vmatprep.subr.bf16.mxu0 %v855
        %1643 = vmatpush1.bf16.msra.mxu0 %v854
        %1644 = vmatprep.subr.bf16.mxu0 %v851
        %1645 = vmatpush1.bf16.msra.mxu0 %v850
        %1646 = vmatprep.subr.bf16.mxu0 %v847
        %1647 = vmatpush1.bf16.msra.mxu0 %v846
        %1648 = vmatprep.subr.bf16.mxu0 0
        %1649 = vmatpush2.bf16.msra.mxu0 0
        %1650 = vmatprep.subr.bf16.mxu0 0
        %1651 = vmatpush2.bf16.msra.mxu0 0
        %1652 = vmatprep.subr.bf16.mxu0 0
        %1653 = vmatpush2.bf16.msra.mxu0 0
        %1654 = vmatprep.subr.bf16.mxu0 0
        %1655 = vmatpush2.bf16.msra.mxu0 0
        %1656 = vmatprep.subr.bf16.mxu0 0
        %1657 = vmatpush2.bf16.msra.mxu0 0
        %1658 = vmatprep.subr.bf16.mxu0 0
        %1659 = vmatpush2.bf16.msra.mxu0 0
        %1660 = vmatprep.subr.bf16.mxu0 0
        %1661 = vmatpush2.bf16.msra.mxu0 0
        %1662 = vmatprep.subr.bf16.mxu0 0
        %1663 = vmatpush2.bf16.msra.mxu0 0
        %1664 = vmatprep.mubr.bf16.mxu0 0
        %1665 = vmatmul.mubr.bf16.gmra.mxu0 %v1590
        %v1666 = vpop.f32.mrf.mxu0
        %v1667 = vadd.f32 0.0, %v1666
        %v1668 = vpop.f32.mrf.mxu0
        %v1669 = vadd.f32 0.0, %v1668
        %v1670 = vpop.f32.mrf.mxu0
        %v1671 = vpop.f32.mrf.mxu0
        %1672 = vdwg.mxu0
        %v1673 = vadd.f32 %v1586, %v1626
        %v1674 = vadd.f32 %v1587, %v1628
        %v1675 = vadd.f32 %v1588, %v1667
        %v1676 = vadd.f32 %v1589, %v1669
        %v1677 = vmul.f32 %v1673, 0.5
        %v1678 = vtanh.pop %v1677
        %v1679 = vadd.f32 %v1678, 1.0
        %v1680 = vmul.f32 %v1679, 0.5
        %v1681 = vmul.f32 %v1674, 0.5
        %v1682 = vtanh.pop %v1681
        %v1683 = vadd.f32 %v1682, 1.0
        %v1684 = vmul.f32 %v1683, 0.5
        %v1685 = vtanh.pop %v1675
        %v1686 = vmul.f32 %v1676, 0.5
        %v1687 = vtanh.pop %v1686
        %v1688 = vadd.f32 %v1687, 1.0
        %v1689 = vmul.f32 %v1688, 0.5
        %v1690 = vmul.f32 %v1684, %v1585
        %v1691 = vmul.f32 %v1680, %v1685
        %v1692 = vadd.f32 %v1690, %v1691
        %v1693 = vtanh.pop %v1692
        %v1694 = vmul.f32 %v1689, %v1693
        %s1695 = sadd.s32 %s269, 6
        %v1696 = vstv %s1695
        %vm1697 = vcmp.lt.s32.totalorder %v1696, %v708
        %v1698 = vsel %vm1697, %v1694, %v1584
        %v1699 = vsel %vm1697, %v1692, %v1585
        %v1700 = vld [vmem:[#allocation2 + $0xe0] sm:$0xff]
        %v1701 = vld [vmem:[#allocation2 + $0xe8] sm:$0xff]
        %v1702 = vld [vmem:[#allocation2 + $0xf0] sm:$0xff]
        %v1703 = vld [vmem:[#allocation2 + $0xf8] sm:$0xff]
        %v1704 = vpack.c.bf16 %v1698, %v1698
        %1705 = vmatprep.subr.bf16.mxu0 %v873
        %1706 = vmatpush1.bf16.msra.mxu0 %v872
        %1707 = vmatprep.subr.bf16.mxu0 %v869
        %1708 = vmatpush1.bf16.msra.mxu0 %v868
        %1709 = vmatprep.subr.bf16.mxu0 %v865
        %1710 = vmatpush1.bf16.msra.mxu0 %v864
        %1711 = vmatprep.subr.bf16.mxu0 %v861
        %1712 = vmatpush1.bf16.msra.mxu0 %v860
        %1713 = vmatprep.subr.bf16.mxu0 %v857
        %1714 = vmatpush1.bf16.msra.mxu0 %v856
        %1715 = vmatprep.subr.bf16.mxu0 %v853
        %1716 = vmatpush1.bf16.msra.mxu0 %v852
        %1717 = vmatprep.subr.bf16.mxu0 %v849
        %1718 = vmatpush1.bf16.msra.mxu0 %v848
        %1719 = vmatprep.subr.bf16.mxu0 %v845
        %1720 = vmatpush1.bf16.msra.mxu0 %v844
        %1721 = vmatprep.subr.bf16.mxu0 0
        %1722 = vmatpush2.bf16.msra.mxu0 0
        %1723 = vmatprep.subr.bf16.mxu0 0
        %1724 = vmatpush2.bf16.msra.mxu0 0
        %1725 = vmatprep.subr.bf16.mxu0 0
        %1726 = vmatpush2.bf16.msra.mxu0 0
        %1727 = vmatprep.subr.bf16.mxu0 0
        %1728 = vmatpush2.bf16.msra.mxu0 0
        %1729 = vmatprep.subr.bf16.mxu0 0
        %1730 = vmatpush2.bf16.msra.mxu0 0
        %1731 = vmatprep.subr.bf16.mxu0 0
        %1732 = vmatpush2.bf16.msra.mxu0 0
        %1733 = vmatprep.subr.bf16.mxu0 0
        %1734 = vmatpush2.bf16.msra.mxu0 0
        %1735 = vmatprep.subr.bf16.mxu0 0
        %1736 = vmatpush2.bf16.msra.mxu0 0
        %1737 = vmatprep.mubr.bf16.mxu0 0
        %1738 = vmatmul.mubr.bf16.gmra.mxu0 %v1704
        %v1739 = vpop.f32.mrf.mxu0
        %v1740 = vadd.f32 0.0, %v1739
        %v1741 = vpop.f32.mrf.mxu0
        %v1742 = vadd.f32 0.0, %v1741
        %v1743 = vpop.f32.mrf.mxu0
        %v1744 = vpop.f32.mrf.mxu0
        %1745 = vdwg.mxu0
        %1746 = vmatprep.subr.bf16.mxu0 %v875
        %1747 = vmatpush1.bf16.msra.mxu0 %v874
        %1748 = vmatprep.subr.bf16.mxu0 %v871
        %1749 = vmatpush1.bf16.msra.mxu0 %v870
        %1750 = vmatprep.subr.bf16.mxu0 %v867
        %1751 = vmatpush1.bf16.msra.mxu0 %v866
        %1752 = vmatprep.subr.bf16.mxu0 %v863
        %1753 = vmatpush1.bf16.msra.mxu0 %v862
        %1754 = vmatprep.subr.bf16.mxu0 %v859
        %1755 = vmatpush1.bf16.msra.mxu0 %v858
        %1756 = vmatprep.subr.bf16.mxu0 %v855
        %1757 = vmatpush1.bf16.msra.mxu0 %v854
        %1758 = vmatprep.subr.bf16.mxu0 %v851
        %1759 = vmatpush1.bf16.msra.mxu0 %v850
        %1760 = vmatprep.subr.bf16.mxu0 %v847
        %1761 = vmatpush1.bf16.msra.mxu0 %v846
        %1762 = vmatprep.subr.bf16.mxu0 0
        %1763 = vmatpush2.bf16.msra.mxu0 0
        %1764 = vmatprep.subr.bf16.mxu0 0
        %1765 = vmatpush2.bf16.msra.mxu0 0
        %1766 = vmatprep.subr.bf16.mxu0 0
        %1767 = vmatpush2.bf16.msra.mxu0 0
        %1768 = vmatprep.subr.bf16.mxu0 0
        %1769 = vmatpush2.bf16.msra.mxu0 0
        %1770 = vmatprep.subr.bf16.mxu0 0
        %1771 = vmatpush2.bf16.msra.mxu0 0
        %1772 = vmatprep.subr.bf16.mxu0 0
        %1773 = vmatpush2.bf16.msra.mxu0 0
        %1774 = vmatprep.subr.bf16.mxu0 0
        %1775 = vmatpush2.bf16.msra.mxu0 0
        %1776 = vmatprep.subr.bf16.mxu0 0
        %1777 = vmatpush2.bf16.msra.mxu0 0
        %1778 = vmatprep.mubr.bf16.mxu0 0
        %1779 = vmatmul.mubr.bf16.gmra.mxu0 %v1704
        %v1780 = vpop.f32.mrf.mxu0
        %v1781 = vadd.f32 0.0, %v1780
        %v1782 = vpop.f32.mrf.mxu0
        %v1783 = vadd.f32 0.0, %v1782
        %v1784 = vpop.f32.mrf.mxu0
        %v1785 = vpop.f32.mrf.mxu0
        %1786 = vdwg.mxu0
        %v1787 = vadd.f32 %v1700, %v1740
        %v1788 = vadd.f32 %v1701, %v1742
        %v1789 = vadd.f32 %v1702, %v1781
        %v1790 = vadd.f32 %v1703, %v1783
        %v1791 = vmul.f32 %v1787, 0.5
        %v1792 = vtanh.pop %v1791
        %v1793 = vadd.f32 %v1792, 1.0
        %v1794 = vmul.f32 %v1793, 0.5
        %v1795 = vmul.f32 %v1788, 0.5
        %v1796 = vtanh.pop %v1795
        %v1797 = vadd.f32 %v1796, 1.0
        %v1798 = vmul.f32 %v1797, 0.5
        %v1799 = vtanh.pop %v1789
        %v1800 = vmul.f32 %v1790, 0.5
        %v1801 = vtanh.pop %v1800
        %v1802 = vadd.f32 %v1801, 1.0
        %v1803 = vmul.f32 %v1802, 0.5
        %v1804 = vmul.f32 %v1798, %v1699
        %v1805 = vmul.f32 %v1794, %v1799
        %v1806 = vadd.f32 %v1804, %v1805
        %v1807 = vtanh.pop %v1806
        %v1808 = vmul.f32 %v1803, %v1807
        %s1809 = sadd.s32 %s269, 7
        %v1810 = vstv %s1809
        %vm1811 = vcmp.lt.s32.totalorder %v1810, %v708
        %v1812 = vsel %vm1811, %v1808, %v1698
        %v1813 = vsel %vm1811, %v1806, %v1699
        %1814 = vst [vmem:[#allocation3] sm:$0xff] %v1812
        %1815 = vst [vmem:[#allocation4] sm:$0xff] %v1813
      $region56: #{lstm_forward.1} parent=47 // pred_fallthru
        _
      %p1816 = scmp.eq.s32.totalorder %s20, 1
      // Predicated region
      $region57: #{lstm_forward.1} parent=47 // pred_check
        %p1817 = pneg %p1816
      $region58: #{lstm_forward.1} parent=47 // pred_check_branch
        %1819 = sbr.rel (%p1817) target = $region60
      $region59: #{lstm_forward.1} parent=47 // pred_region
        %v1820 = vld [vmem:[#allocation3] sm:$0xff]
        %v1821 = vpack.c.bf16 %v1820, %v1820
        %v1822 = vld [vmem:[%s6] sm:$0xf]
        %v1823 = vld [vmem:[%s6 + $0x4] sm:$0xf]
        %v1824 = vld [vmem:[%s6 + $0x8] sm:$0xf]
        %v1825 = vld [vmem:[%s6 + $0xc] sm:$0xf]
        %v1826 = vld [vmem:[%s6 + $0x10] sm:$0xf]
        %v1827 = vld [vmem:[%s6 + $0x14] sm:$0xf]
        %v1828 = vld [vmem:[%s6 + $0x18] sm:$0xf]
        %v1829 = vld [vmem:[%s6 + $0x1c] sm:$0xf]
        %v1830 = vld [vmem:[%s6 + $0x20] sm:$0xf]
        %v1831 = vld [vmem:[%s6 + $0x24] sm:$0xf]
        %v1832 = vld [vmem:[%s6 + $0x28] sm:$0xf]
        %v1833 = vld [vmem:[%s6 + $0x2c] sm:$0xf]
        %v1834 = vld [vmem:[%s6 + $0x30] sm:$0xf]
        %v1835 = vld [vmem:[%s6 + $0x34] sm:$0xf]
        %v1836 = vld [vmem:[%s6 + $0x38] sm:$0xf]
        %v1837 = vld [vmem:[%s6 + $0x3c] sm:$0xf]
        %v1838 = vld [vmem:[%s7] sm:$0x1]
        %v1840 = vlaneseq
        %v1841 = vshrl.u32 %v1840, 7
        %v1842 = vsub.s32 0, %v1841
        %v1843 = vrot.slane %v1838, %v1842
        %v1861 = vunpack.c.l.b16 %v1822
        %v1862 = vunpack.c.l.b16 %v1823
        %v1863 = vunpack.c.l.b16 %v1824
        %v1864 = vunpack.c.l.b16 %v1825
        %v1865 = vunpack.c.l.b16 %v1826
        %v1866 = vunpack.c.l.b16 %v1827
        %v1867 = vunpack.c.l.b16 %v1828
        %v1868 = vunpack.c.l.b16 %v1829
        %v1869 = vunpack.c.l.b16 %v1830
        %v1870 = vunpack.c.l.b16 %v1831
        %v1871 = vunpack.c.l.b16 %v1832
        %v1872 = vunpack.c.l.b16 %v1833
        %v1873 = vunpack.c.l.b16 %v1834
        %v1874 = vunpack.c.l.b16 %v1835
        %v1875 = vunpack.c.l.b16 %v1836
        %v1876 = vunpack.c.l.b16 %v1837
        %v1877 = vpack.c.b16 %v1862, %v1861
        %v1878 = vpack.c.b16 %v1864, %v1863
        %v1879 = vpack.c.b16 %v1866, %v1865
        %v1880 = vpack.c.b16 %v1868, %v1867
        %v1881 = vpack.c.b16 %v1870, %v1869
        %v1882 = vpack.c.b16 %v1872, %v1871
        %v1883 = vpack.c.b16 %v1874, %v1873
        %v1884 = vpack.c.b16 %v1876, %v1875
        %1893 = vmatprep.subr.bf16.mxu0 0
        %1894 = vmatpush1.bf16.msra.mxu0 %v1884
        %1895 = vmatprep.subr.bf16.mxu0 0
        %1896 = vmatpush1.bf16.msra.mxu0 %v1883
        %1897 = vmatprep.subr.bf16.mxu0 0
        %1898 = vmatpush1.bf16.msra.mxu0 %v1882
        %1899 = vmatprep.subr.bf16.mxu0 0
        %1900 = vmatpush1.bf16.msra.mxu0 %v1881
        %1901 = vmatprep.subr.bf16.mxu0 0
        %1902 = vmatpush1.bf16.msra.mxu0 %v1880
        %1903 = vmatprep.subr.bf16.mxu0 0
        %1904 = vmatpush1.bf16.msra.mxu0 %v1879
        %1905 = vmatprep.subr.bf16.mxu0 0
        %1906 = vmatpush1.bf16.msra.mxu0 %v1878
        %1907 = vmatprep.subr.bf16.mxu0 0
        %1908 = vmatpush1.bf16.msra.mxu0 %v1877
        %1909 = vmatprep.subr.bf16.mxu0 0
        %1910 = vmatpush2.bf16.msra.mxu0 0
        %1911 = vmatprep.subr.bf16.mxu0 0
        %1912 = vmatpush2.bf16.msra.mxu0 0
        %1913 = vmatprep.subr.bf16.mxu0 0
        %1914 = vmatpush2.bf16.msra.mxu0 0
        %1915 = vmatprep.subr.bf16.mxu0 0
        %1916 = vmatpush2.bf16.msra.mxu0 0
        %1917 = vmatprep.subr.bf16.mxu0 0
        %1918 = vmatpush2.bf16.msra.mxu0 0
        %1919 = vmatprep.subr.bf16.mxu0 0
        %1920 = vmatpush2.bf16.msra.mxu0 0
        %1921 = vmatprep.subr.bf16.mxu0 0
        %1922 = vmatpush2.bf16.msra.mxu0 0
        %1923 = vmatprep.subr.bf16.mxu0 0
        %1924 = vmatpush2.bf16.msra.mxu0 0
        %1925 = vmatprep.mubr.bf16.mxu0 0
        %1926 = vmatmul.mubr.bf16.gmra.mxu0 %v1821
        %v1927 = vpop.f32.mrf.mxu0
        %v1928 = vadd.f32 %v1843, %v1927
        %v1929 = vpop.f32.mrf.mxu0
        %v1930 = vpop.f32.mrf.mxu0
        %v1931 = vpop.f32.mrf.mxu0
        %1932 = vdwg.mxu0
        %1933 = vst [vmem:[%s8] sm:$0xff] %v1928
      $region60: #{lstm_forward.1} parent=47 // pred_fallthru
        _
      // Predicated region
      $region61: #{lstm_forward.1} parent=47 // pred_check
        %p1934 = pneg %p185
      $region62: #{lstm_forward.1} parent=47 // pred_check_branch
        %1936 = sbr.rel (%p1934) target = $region64
      $region63: #{lstm_forward.1} parent=47 // pred_region
        _
      $region64: #{lstm_forward.1} parent=47 // pred_fallthru
        _
      // Predicated region
      $region65: #{lstm_forward.1} parent=47 // pred_check
        %p1937 = pneg %p185
      $region66: #{lstm_forward.1} parent=47 // pred_check_branch
        %1939 = sbr.rel (%p1937) target = $region68
      $region67: #{lstm_forward.1} parent=47 // pred_region
        _
      $region68: #{lstm_forward.1} parent=47 // pred_fallthru
        _
    $region48: #{lstm_forward.1} parent=5 // pred_fallthru
      _
    %p1940 = scmp.le.s32.totalorder 2, %s15
    // Predicated region
    $region69: #{lstm_forward.1} parent=5 // pred_check
      %p1941 = pneg %p1940
    $region70: #{lstm_forward.1} parent=5 // pred_check_branch
      %1943 = sbr.rel (%p1941) target = $region72
    $region71: #{lstm_forward.1} parent=5 // pred_region
      %s1944 = ssub.s32 %s15, 2
    $region72: #{lstm_forward.1} parent=5 // pred_fallthru
      _
  $region6: #{lstm_forward.1} parent=0 // loop_footer
    %s19 = sadd.s32 1, %s15
  $region7: #{lstm_forward.1} parent=0 // loop_footer_branch
    %14 = sbr.rel target = $region3
  $region8: #{lstm_forward.1} parent=0 // loop_exit
    _

</llo_original>
